<compile_context>
chip_gen: v7x
topology: tpu7x:2x2x1
jax: 0.10.0
libtpu: 0.0.40
codegen_flags: <defaults>
</compile_context>

<pallas_src>
import functools

import jax
import jax.numpy as jnp
from jax.experimental import pallas as pl
from jax.experimental.pallas import tpu as pltpu

# -----------------------------------------------------------------------------
# Constants / small helpers
# -----------------------------------------------------------------------------

DIMS = (64, 128, 320, 512)
DEPTHS = (2, 2, 6, 2)
MIXERS = ("convformer", "convformer", "transformer", "transformer")
HEAD_DIM = 32

_STAR_S = 0.8944271909999159
_STAR_B = -0.4472135954999579
_LRELU_SLOPE = 0.01
_LN_EPS = 1e-6
_IN_EPS = 1e-5

_PALLAS_MIN_ROWS = 256       # below this, ops go to jnp (per perf review)
_LN_TR = 256                 # layernorm row tile (perf review: >=128 rows)


def _apply_act(y, act):
    if act == "star_relu":
        r = jnp.maximum(y, 0.0)
        return _STAR_S * r * r + _STAR_B
    if act == "lrelu":
        return jnp.where(y >= 0, y, _LRELU_SLOPE * y)
    if act == "relu":
        return jnp.maximum(y, 0.0)
    return y


# -----------------------------------------------------------------------------
# Fused matmul kernel: bf16 operands, f32 accumulator, bias+activation epilogue
# -----------------------------------------------------------------------------

def _mm_kernel(a_ref, b_ref, bias_ref, o_ref, acc_ref, *, act):
    @pl.when(pl.program_id(2) == 0)
    def _():
        acc_ref[...] = jnp.zeros_like(acc_ref)

    acc_ref[...] += jnp.dot(a_ref[...], b_ref[...],
                            preferred_element_type=jnp.float32)

    @pl.when(pl.program_id(2) == pl.num_programs(2) - 1)
    def _():
        y = acc_ref[...] + bias_ref[...]          # (bm,bn) + (1,bn)
        y = _apply_act(y, act)                    # fused epilogue (perf review)
        o_ref[...] = y.astype(o_ref.dtype)


@functools.partial(jax.jit, static_argnames=("act", "bm", "bn", "bk"))
def _matmul_pallas(a, b, bias, *, act, bm, bn, bk):
    M, K = a.shape
    _, N = b.shape
    grid = (M // bm, N // bn, K // bk)
    kern = functools.partial(_mm_kernel, act=act)
    return pl.pallas_call(
        kern,
        out_shape=jax.ShapeDtypeStruct((M, N), jnp.float32),
        grid_spec=pltpu.PrefetchScalarGridSpec(
            num_scalar_prefetch=0,
            grid=grid,
            in_specs=[pl.BlockSpec((bm, bk), lambda i, j, k: (i, k)),
                      pl.BlockSpec((bk, bn), lambda i, j, k: (k, j)),
                      pl.BlockSpec((1, bn), lambda i, j, k: (0, j))],
            out_specs=pl.BlockSpec((bm, bn), lambda i, j, k: (i, j)),
            scratch_shapes=[pltpu.VMEM((bm, bn), jnp.float32)]),
        compiler_params=pltpu.CompilerParams(
            dimension_semantics=("parallel", "parallel", "arbitrary")),
    )(a, b, bias)


@functools.partial(jax.jit, static_argnames=("act",))
def _matmul_jnp(a, b, bias, *, act):
    y = jnp.dot(a.astype(jnp.float32), b.astype(jnp.float32),
                preferred_element_type=jnp.float32)
    if bias is not None:
        y = y + bias.reshape(1, -1).astype(jnp.float32)
    return _apply_act(y, act)


def _pick_bm(M):
    for bm in (512, 256, 128):
        if M >= bm and M % bm == 0:
            return bm
    return None


def _pick_bn(N):
    if N <= 256:
        return N                       # full-extent block (no output padding)
    for bn in (512, 256, 128):
        if N % bn == 0:
            return bn
    return None


def linear(a, w, bias=None, act="none"):
    """a:(M,K) @ w:(K,N) -> f32 (M,N) with fused bias + activation.

    Big ops go through the Pallas MXU kernel (bf16 operands / f32 acc, full-K
    blocks so no K padding, tiles <~4 MB VMEM => safe on v7x's 64 MiB too);
    sub-tile ops (M < 256) fall back to jnp.dot per the perf review."""
    M, K = a.shape
    N = w.shape[1]
    bm, bn = _pick_bm(M), _pick_bn(N)
    use_pallas = (M >= _PALLAS_MIN_ROWS and bm is not None and bn is not None
                  and K * max(bm, bn) * 2 <= 8 * 1024 * 1024)
    if not use_pallas:
        return _matmul_jnp(a, w, bias, act=act)
    a16 = a.astype(jnp.bfloat16)
    w16 = w.astype(jnp.bfloat16)
    b32 = (jnp.zeros((1, N), jnp.float32) if bias is None
           else bias.reshape(1, N).astype(jnp.float32))
    return _matmul_pallas(a16, w16, b32, act=act, bm=bm, bn=bn, bk=K)


# -----------------------------------------------------------------------------
# Convolutions
# -----------------------------------------------------------------------------

@functools.partial(jax.jit, static_argnames=("stride", "padding", "act"))
def conv3d(x, w, bias=None, *, stride=1, padding=1, act="none"):
    """x:(N,D,H,W,Cin), w:(kd,kh,kw,Cin,Cout). im2col (bf16) + fused Pallas matmul.
    TODO(synk): replace im2col with a halo'd VMEM tap-accumulation kernel to
    remove the k^3 patch materialisation entirely (top perf-review item)."""
    N, D, H, W, Cin = x.shape
    kd, kh, kw, _, Cout = w.shape
    s, p = stride, padding
    xp = jnp.pad(x, ((0, 0), (p, p), (p, p), (p, p), (0, 0))).astype(jnp.bfloat16)
    Do = (D + 2 * p - kd) // s + 1
    Ho = (H + 2 * p - kh) // s + 1
    Wo = (W + 2 * p - kw) // s + 1
    cols = []
    for a in range(kd):
        for b in range(kh):
            for c in range(kw):
                cols.append(xp[:, a:a + s * Do:s, b:b + s * Ho:s, c:c + s * Wo:s, :])
    patches = jnp.stack(cols, axis=-2)                   # (N,Do,Ho,Wo,k^3,Cin)
    patches = patches.reshape(N * Do * Ho * Wo, kd * kh * kw * Cin)
    out = linear(patches, w.reshape(kd * kh * kw * Cin, Cout).astype(jnp.bfloat16),
                 bias, act=act)
    return out.reshape(N, Do, Ho, Wo, Cout)


@functools.partial(jax.jit, static_argnames=("k",))
def transp_conv3d(x, w, *, k):
    """Transposed conv, kernel == stride == k, padding 0 (MONAI upsample).
    x:(N,D,H,W,Cin), w:(Cin,k,k,k,Cout) -> (N,D*k,H*k,W*k,Cout)."""
    N, D, H, W, Cin = x.shape
    Cout = w.shape[-1]
    y = linear(x.reshape(-1, Cin), w.reshape(Cin, k * k * k * Cout))
    y = y.reshape(N, D, H, W, k, k, k, Cout)
    y = y.transpose(0, 1, 4, 2, 5, 3, 6, 7).reshape(N, D * k, H * k, W * k, Cout)
    return y


# ---- depthwise 7^3 conv: in-kernel tap accumulation, no patch materialisation ---

def _dw_kernel(xp_ref, w_ref, o_ref, acc_ref, *, D, H, W, K):
    # xp_ref: (1, Dp, Hp, Wp, C) padded volume (one batch) in VMEM
    # w_ref : (K*K, K, C) depthwise taps
    acc_ref[...] = jnp.zeros_like(acc_ref)

    def tap(t, carry):
        a = t // K
        b = t - a * K
        for c in range(K):                         # static unroll along sublanes
            xa = xp_ref[0, pl.ds(a, D), pl.ds(b, H), pl.ds(c, W), :]
            wv = w_ref[t, c, :]
            acc_ref[...] += xa * wv[None, None, None, :]
        return carry

    jax.lax.fori_loop(0, K * K, tap, 0)
    o_ref[0] = acc_ref[...]


@jax.jit
def depthwise_conv3d(x, w):
    """Depthwise 7^3 conv, stride 1, pad 3. x:(N,D,H,W,C), w:(7,7,7,C).
    The whole padded volume lives in VMEM and the 343 taps are accumulated
    in-kernel (perf review: removes the 343x im2col HBM expansion)."""
    N, D, H, W, C = x.shape
    K = w.shape[0]
    p = K // 2
    xp = jnp.pad(x.astype(jnp.float32), ((0, 0), (p, p), (p, p), (p, p), (0, 0)))
    Dp, Hp, Wp = D + 2 * p, H + 2 * p, W + 2 * p
    w2 = w.reshape(K * K, K, C).astype(jnp.float32)
    kern = functools.partial(_dw_kernel, D=D, H=H, W=W, K=K)
    return pl.pallas_call(
        kern,
        out_shape=jax.ShapeDtypeStruct((N, D, H, W, C), jnp.float32),
        grid_spec=pltpu.PrefetchScalarGridSpec(
            num_scalar_prefetch=0,
            grid=(N,),
            in_specs=[pl.BlockSpec((1, Dp, Hp, Wp, C), lambda n: (n, 0, 0, 0, 0)),
                      pl.BlockSpec((K * K, K, C), lambda n: (0, 0, 0))],
            out_specs=pl.BlockSpec((1, D, H, W, C), lambda n: (n, 0, 0, 0, 0)),
            scratch_shapes=[pltpu.VMEM((D, H, W, C), jnp.float32)]),
        compiler_params=pltpu.CompilerParams(dimension_semantics=("parallel",)),
    )(xp, w2)


# -----------------------------------------------------------------------------
# LayerNorm (row-tiled)
# -----------------------------------------------------------------------------

def _ln_kernel(x_ref, g_ref, b_ref, o_ref, *, eps):
    x = x_ref[...].astype(jnp.float32)
    mu = jnp.mean(x, axis=-1, keepdims=True)
    xc = x - mu
    var = jnp.mean(xc * xc, axis=-1, keepdims=True)
    y = xc * jax.lax.rsqrt(var + eps)
    o_ref[...] = (y * g_ref[...] + b_ref[...]).astype(o_ref.dtype)


@jax.jit
def _layer_norm_pallas(x2, g, b):
    R, C = x2.shape
    return pl.pallas_call(
        functools.partial(_ln_kernel, eps=_LN_EPS),
        out_shape=jax.ShapeDtypeStruct((R, C), jnp.float32),
        grid_spec=pltpu.PrefetchScalarGridSpec(
            num_scalar_prefetch=0,
            grid=(R // _LN_TR,),
            in_specs=[pl.BlockSpec((_LN_TR, C), lambda i: (i, 0)),
                      pl.BlockSpec((1, C), lambda i: (0, 0)),
                      pl.BlockSpec((1, C), lambda i: (0, 0))],
            out_specs=pl.BlockSpec((_LN_TR, C), lambda i: (i, 0))),
        compiler_params=pltpu.CompilerParams(dimension_semantics=("parallel",)),
    )(x2, g.reshape(1, C), b.reshape(1, C))


@jax.jit
def _layer_norm_jnp(x2, g, b):
    mu = jnp.mean(x2, axis=-1, keepdims=True)
    var = jnp.mean(jnp.square(x2 - mu), axis=-1, keepdims=True)
    return (x2 - mu) * jax.lax.rsqrt(var + _LN_EPS) * g.reshape(1, -1) + b.reshape(1, -1)


def layer_norm(x, g, b):
    shp = x.shape
    C = shp[-1]
    x2 = x.reshape(-1, C).astype(jnp.float32)
    R = x2.shape[0]
    if R >= _LN_TR and R % _LN_TR == 0:
        out = _layer_norm_pallas(x2, g.astype(jnp.float32), b.astype(jnp.float32))
    else:
        out = _layer_norm_jnp(x2, g, b)
    return out.reshape(shp)


# -----------------------------------------------------------------------------
# InstanceNorm (channels-last, no transpose) + fused residual / activation
# -----------------------------------------------------------------------------

def _in_stats_kernel(x_ref, sum_ref, sq_ref, acc_s, acc_q):
    r = pl.program_id(1)

    @pl.when(r == 0)
    def _():
        acc_s[...] = jnp.zeros_like(acc_s)
        acc_q[...] = jnp.zeros_like(acc_q)

    x = x_ref[0].astype(jnp.float32)                     # (TR, C)
    acc_s[...] += jnp.sum(x, axis=0, keepdims=True)
    acc_q[...] += jnp.sum(x * x, axis=0, keepdims=True)

    @pl.when(r == pl.num_programs(1) - 1)
    def _():
        sum_ref[0] = acc_s[...]
        sq_ref[0] = acc_q[...]


@functools.partial(jax.jit, static_argnames=("tr",))
def _in_stats_pallas(x3, *, tr):
    N, P, C = x3.shape
    return pl.pallas_call(
        _in_stats_kernel,
        out_shape=(jax.ShapeDtypeStruct((N, 1, C), jnp.float32),
                   jax.ShapeDtypeStruct((N, 1, C), jnp.float32)),
        grid_spec=pltpu.PrefetchScalarGridSpec(
            num_scalar_prefetch=0,
            grid=(N, P // tr),
            in_specs=[pl.BlockSpec((1, tr, C), lambda n, r: (n, r, 0))],
            out_specs=(pl.BlockSpec((1, 1, C), lambda n, r: (n, 0, 0)),
                       pl.BlockSpec((1, 1, C), lambda n, r: (n, 0, 0))),
            scratch_shapes=[pltpu.VMEM((1, C), jnp.float32),
                            pltpu.VMEM((1, C), jnp.float32)]),
        compiler_params=pltpu.CompilerParams(
            dimension_semantics=("parallel", "arbitrary")),
    )(x3)


def _in_apply_kernel(x_ref, sc_ref, sh_ref, o_ref, *, act):
    x = x_ref[0].astype(jnp.float32)                     # (TR, C)
    y = x * sc_ref[0] + sh_ref[0]
    o_ref[0] = _apply_act(y, act).astype(o_ref.dtype)


def _in_apply_res_kernel(x_ref, res_ref, sc_ref, sh_ref, o_ref):
    x = x_ref[0].astype(jnp.float32)
    y = x * sc_ref[0] + sh_ref[0] + res_ref[0].astype(jnp.float32)
    o_ref[0] = jnp.where(y >= 0, y, _LRELU_SLOPE * y).astype(o_ref.dtype)


@functools.partial(jax.jit, static_argnames=("tr", "act"))
def _in_apply_pallas(x3, scale, shift, *, tr, act):
    N, P, C = x3.shape
    return pl.pallas_call(
        functools.partial(_in_apply_kernel, act=act),
        out_shape=jax.ShapeDtypeStruct((N, P, C), jnp.float32),
        grid_spec=pltpu.PrefetchScalarGridSpec(
            num_scalar_prefetch=0,
            grid=(N, P // tr),
            in_specs=[pl.BlockSpec((1, tr, C), lambda n, r: (n, r, 0)),
                      pl.BlockSpec((1, 1, C), lambda n, r: (n, 0, 0)),
                      pl.BlockSpec((1, 1, C), lambda n, r: (n, 0, 0))],
            out_specs=pl.BlockSpec((1, tr, C), lambda n, r: (n, r, 0))),
        compiler_params=pltpu.CompilerParams(
            dimension_semantics=("parallel", "parallel")),
    )(x3, scale, shift)


@functools.partial(jax.jit, static_argnames=("tr",))
def _in_apply_res_pallas(x3, res, scale, shift, *, tr):
    N, P, C = x3.shape
    return pl.pallas_call(
        _in_apply_res_kernel,
        out_shape=jax.ShapeDtypeStruct((N, P, C), jnp.float32),
        grid_spec=pltpu.PrefetchScalarGridSpec(
            num_scalar_prefetch=0,
            grid=(N, P // tr),
            in_specs=[pl.BlockSpec((1, tr, C), lambda n, r: (n, r, 0)),
                      pl.BlockSpec((1, tr, C), lambda n, r: (n, r, 0)),
                      pl.BlockSpec((1, 1, C), lambda n, r: (n, 0, 0)),
                      pl.BlockSpec((1, 1, C), lambda n, r: (n, 0, 0))],
            out_specs=pl.BlockSpec((1, tr, C), lambda n, r: (n, r, 0))),
        compiler_params=pltpu.CompilerParams(
            dimension_semantics=("parallel", "parallel")),
    )(x3, res, scale, shift)


@functools.partial(jax.jit, static_argnames=("act", "has_res"))
def _instance_norm_jnp(x3, residual, *, act, has_res):
    x = x3.astype(jnp.float32)
    mu = jnp.mean(x, axis=1, keepdims=True)
    var = jnp.mean(jnp.square(x - mu), axis=1, keepdims=True)
    y = (x - mu) * jax.lax.rsqrt(var + _IN_EPS)
    if has_res:
        y = y + residual.astype(jnp.float32)
    return _apply_act(y, act)


def _in_row_tile(P):
    for t in (2048, 1024, 512, 256):
        if P % t == 0:
            return t
    return None


def instance_norm(x, *, act="none", residual=None):
    """InstanceNorm3d (affine=False, eps=1e-5) over spatial dims per (n, c),
    channels-last.  If `residual` is given the res-block tail
    (norm(x) + residual -> LeakyReLU) is fused into the apply kernel."""
    N, D, H, W, C = x.shape
    P = D * H * W
    x3 = x.reshape(N, P, C)
    r3 = None if residual is None else residual.reshape(N, P, C)
    tr = _in_row_tile(P)
    if tr is None:
        eff_act = "lrelu" if residual is not None else act
        y = _instance_norm_jnp(x3, r3, act=eff_act, has_res=residual is not None)
        return y.reshape(N, D, H, W, C)
    s, q = _in_stats_pallas(x3.astype(jnp.float32), tr=tr)
    mean = s / float(P)
    var = q / float(P) - mean * mean
    scale = jax.lax.rsqrt(var + _IN_EPS)
    shift = -mean * scale
    if residual is None:
        y = _in_apply_pallas(x3, scale, shift, tr=tr, act=act)
    else:
        y = _in_apply_res_pallas(x3, r3, scale, shift, tr=tr)
    return y.reshape(N, D, H, W, C)


# -----------------------------------------------------------------------------
# Parameters
# -----------------------------------------------------------------------------

class KeyGen:
    def __init__(self, seed):
        self.key = jax.random.PRNGKey(seed)

    def __call__(self):
        self.key, sub = jax.random.split(self.key)
        return sub


def winit(kg, shape, scale=0.02):
    return scale * jax.random.normal(kg(), shape, dtype=jnp.float32)


def init_params(kg, in_channels, out_channels):
    p = {}
    # Stem: conv k7 s4 p2 + channel LayerNorm
    # TODO(synk): exact Stem definition (kernel/padding/norm) not in provided source.
    p["stem"] = {"w": winit(kg, (7, 7, 7, in_channels, DIMS[0])),
                 "b": jnp.zeros((DIMS[0],), jnp.float32),
                 "g": jnp.ones((DIMS[0],), jnp.float32),
                 "be": jnp.zeros((DIMS[0],), jnp.float32)}
    stages = []
    prev = DIMS[0]
    for i in range(4):
        dim = DIMS[i]
        st = {}
        if prev != dim:
            # TODO(synk): pre-norm of the stage downsampler omitted (unknown source).
            st["down_w"] = winit(kg, (3, 3, 3, prev, dim))
            st["down_b"] = jnp.zeros((dim,), jnp.float32)
        blocks = []
        for _ in range(DEPTHS[i]):
            blk = {"n1_g": jnp.ones((dim,), jnp.float32), "n1_b": jnp.zeros((dim,), jnp.float32),
                   "n2_g": jnp.ones((dim,), jnp.float32), "n2_b": jnp.zeros((dim,), jnp.float32),
                   "fc1": winit(kg, (dim, 4 * dim)), "fc2": winit(kg, (4 * dim, dim))}
            if MIXERS[i] == "convformer":
                mid = 2 * dim
                blk["pw1"] = winit(kg, (dim, mid))
                blk["dw"] = winit(kg, (7, 7, 7, mid))
                blk["pw2"] = winit(kg, (mid, dim))
            else:
                blk["qkv"] = winit(kg, (dim, 3 * dim))
                blk["proj"] = winit(kg, (dim, dim))
            blocks.append(blk)
        st["blocks"] = blocks
        stages.append(st)
        prev = dim
    p["stages"] = stages

    def res_block_params(cin, cout):  # UnetResBlock, cin == cout, stride 1
        return {"w1": winit(kg, (3, 3, 3, cin, cout)),
                "w2": winit(kg, (3, 3, 3, cout, cout))}

    p["skip"] = [res_block_params(DIMS[3], DIMS[3]), res_block_params(DIMS[2], DIMS[2]),
                 res_block_params(DIMS[1], DIMS[1]), res_block_params(DIMS[0], DIMS[0])]

    def upsample_params(cin, cout, k):
        return {"tw": winit(kg, (2 * cin, k, k, k, cout)),
                "res": res_block_params(cout, cout), "k": k}

    p["dec"] = [upsample_params(DIMS[3], DIMS[2], 2),
                upsample_params(DIMS[2], DIMS[1], 2),
                upsample_params(DIMS[1], DIMS[0], 2),
                upsample_params(DIMS[0], DIMS[0] // 4, 4)]

    p["final_w"] = winit(kg, (DIMS[0] // 4, out_channels))  # 1x1x1 conv, bias=False
    return p


# -----------------------------------------------------------------------------
# Model blocks
# -----------------------------------------------------------------------------

def unet_res_block(x, prm):
    # MONAI UnetResBlock: conv->IN->lrelu->conv->IN, +residual, lrelu
    r = x
    h = conv3d(x, prm["w1"], stride=1, padding=1)
    h = instance_norm(h, act="lrelu")
    h = conv3d(h, prm["w2"], stride=1, padding=1)
    return instance_norm(h, residual=r)        # fused residual add + LeakyReLU


def metaformer_block(x, prm, mixer):
    N, D, H, W, C = x.shape
    h = layer_norm(x, prm["n1_g"], prm["n1_b"])
    if mixer == "convformer":
        h1 = linear(h.reshape(-1, C), prm["pw1"], act="star_relu")   # fused StarReLU
        h1 = h1.reshape(N, D, H, W, -1)
        h1 = depthwise_conv3d(h1, prm["dw"])
        h1 = linear(h1.reshape(-1, h1.shape[-1]), prm["pw2"]).reshape(N, D, H, W, C)
        x = x + h1
    else:
        P = D * H * W
        heads, hd = C // HEAD_DIM, HEAD_DIM
        qkv = linear(h.reshape(N * P, C), prm["qkv"])
        qkv = qkv.reshape(N, P, 3, heads, hd).transpose(2, 0, 3, 1, 4)  # (3,N,h,P,hd)
        q, k, v = qkv[0], qkv[1], qkv[2]
        attn = jnp.einsum("nhpd,nhqd->nhpq", q, k) * (hd ** -0.5)
        attn = jax.nn.softmax(attn, axis=-1)      # <= 8 tokens -> plain JAX (per review)
        o = jnp.einsum("nhpq,nhqd->nhpd", attn, v)
        o = o.transpose(0, 2, 1, 3).reshape(N * P, C)
        o = linear(o, prm["proj"]).reshape(N, D, H, W, C)
        x = x + o
    # TODO(synk): layer_scale / res_scale and drop_path (rate 0 -> identity) omitted.
    h = layer_norm(x, prm["n2_g"], prm["n2_b"])
    h = linear(h.reshape(-1, C), prm["fc1"], act="star_relu")        # fused StarReLU
    h = linear(h, prm["fc2"]).reshape(N, D, H, W, C)
    return x + h


def metaformer_stage(x, prm, mixer):
    if "down_w" in prm:
        x = conv3d(x, prm["down_w"], prm["down_b"], stride=2, padding=1)
    for blk in prm["blocks"]:
        x = metaformer_block(x, blk, mixer)
    return x


def caformer(x, params):
    s = params["stem"]
    x = conv3d(x, s["w"], s["b"], stride=4, padding=2)
    x = layer_norm(x, s["g"], s["be"])
    hidden = []
    for i in range(4):
        x = metaformer_stage(x, params["stages"][i], MIXERS[i])
        hidden.append(x)
    return x, hidden


def upsample(inp, skip, prm):
    out = jnp.concatenate([inp, skip], axis=-1)      # channel cat (dim=1 in NCDHW)
    out = transp_conv3d(out, prm["tw"], k=prm["k"])
    out = unet_res_block(out, prm["res"])
    return out


def caformer_unet_forward(x_ncdhw, params):
    # NCDHW -> NDHWC
    x = jnp.transpose(x_ncdhw, (0, 2, 3, 4, 1)).astype(jnp.float32)
    x, hs = caformer(x, params)
    y = unet_res_block(hs[3], params["skip"][0])
    x = upsample(x, y, params["dec"][0])
    y = unet_res_block(hs[2], params["skip"][1])
    x = upsample(x, y, params["dec"][1])
    y = unet_res_block(hs[1], params["skip"][2])
    x = upsample(x, y, params["dec"][2])
    y = unet_res_block(hs[0], params["skip"][3])
    x = upsample(x, y, params["dec"][3])
    # final_conv: 1x1x1 conv (bias=False) -> InstanceNorm -> ReLU
    # TODO(synk): MONAI get_conv_layer defaults to conv_only=True (norm/act ignored);
    #             norm+act are applied here since they were explicitly passed.
    N, D, H, W, C = x.shape
    x = linear(x.reshape(-1, C), params["final_w"]).reshape(N, D, H, W, -1)
    x = instance_norm(x, act="relu")
    # NDHWC -> NCDHW
    return jnp.transpose(x, (0, 4, 1, 2, 3))


# -----------------------------------------------------------------------------
# Main
# -----------------------------------------------------------------------------

if __name__ == "__main__":
    in_channels, out_channels = 1, 2
    # Smallest spatial size compatible with total stride 32 (stem /4, 3 stages /2).
    x = jax.random.normal(jax.random.PRNGKey(0), (2, in_channels, 32, 32, 32),
                          jnp.float32)

    kg = KeyGen(0)
    params = init_params(kg, in_channels, out_channels)

    out = caformer_unet_forward(x, params)
    out = jax.block_until_ready(out)
    assert out.shape == (2, out_channels, 32, 32, 32), out.shape
    assert bool(jnp.all(jnp.isfinite(out)))
    print("KERNEL_OK")
</pallas_src>

<mosaic_0001>
module attributes {stable_mosaic.version = 11 : i64} {
  func.func @_mm_kernel(%arg0: i32, %arg1: i32, %arg2: i32, %arg3: memref<512x343xbf16, #tpu.memory_space<vmem>>, %arg4: memref<343x64xbf16, #tpu.memory_space<vmem>>, %arg5: memref<1x64xf32, #tpu.memory_space<vmem>>, %arg6: memref<512x64xf32, #tpu.memory_space<vmem>>, %arg7: memref<512x64xf32, #tpu.memory_space<vmem>>) attributes {dimension_semantics = [#tpu.dimension_semantics<parallel>, #tpu.dimension_semantics<parallel>, #tpu.dimension_semantics<arbitrary>], iteration_bounds = array<i64: 2, 1, 1>, scalar_prefetch = 0 : i64, scratch_operands = 1 : i64, tpu.core_type = #tpu.core_type<tc>, window_params = [{transform_indices = @transform_0, window_bounds = array<i64: 512, 343>}, {transform_indices = @transform_1, window_bounds = array<i64: 343, 64>}, {transform_indices = @transform_2, window_bounds = array<i64: 1, 64>}, {transform_indices = @transform_3, window_bounds = array<i64: 512, 64>}]} {
    %c0_i32 = arith.constant 0 : i32
    %0 = arith.cmpi eq, %arg2, %c0_i32 : i32
    %1 = arith.extui %0 : i1 to i32
    %c0_i32_0 = arith.constant 0 : i32
    %2 = arith.cmpi ne, %1, %c0_i32_0 : i32
    scf.if %2 {
      %cst_10 = arith.constant 0.000000e+00 : f32
      %12 = vector.broadcast %cst_10 : f32 to vector<512x64xf32>
      %c0_11 = arith.constant 0 : index
      %c0_12 = arith.constant 0 : index
      %13 = vector.load %arg7[%c0_11, %c0_12] : memref<512x64xf32, #tpu.memory_space<vmem>>, vector<512x64xf32>
      tpu.vector_store %arg7[%c0_11, %c0_12], %12 {strides = array<i32>} : memref<512x64xf32, #tpu.memory_space<vmem>>, vector<512x64xf32>,
    } else {
    }
    %c0 = arith.constant 0 : index
    %c0_1 = arith.constant 0 : index
    %3 = vector.load %arg7[%c0, %c0_1] : memref<512x64xf32, #tpu.memory_space<vmem>>, vector<512x64xf32>
    %c0_2 = arith.constant 0 : index
    %c0_3 = arith.constant 0 : index
    %4 = vector.load %arg3[%c0_2, %c0_3] : memref<512x343xbf16, #tpu.memory_space<vmem>>, vector<512x343xbf16>
    %c0_4 = arith.constant 0 : index
    %c0_5 = arith.constant 0 : index
    %5 = vector.load %arg4[%c0_4, %c0_5] : memref<343x64xbf16, #tpu.memory_space<vmem>>, vector<343x64xbf16>
    %cst = arith.constant dense<0.000000e+00> : vector<512x64xf32>
    %6 = tpu.matmul %4, %5, %cst {dimension_numbers = #tpu.dot_dimension_numbers<[1], [0], [0], [1], [0, 0, 1, 1], [], []>} : vector<512x343xbf16>, vector<343x64xbf16>, vector<512x64xf32> -> vector<512x64xf32>
    %7 = arith.addf %3, %6 : vector<512x64xf32>
    %c0_6 = arith.constant 0 : index
    %c0_7 = arith.constant 0 : index
    %8 = vector.load %arg7[%c0_6, %c0_7] : memref<512x64xf32, #tpu.memory_space<vmem>>, vector<512x64xf32>
    tpu.vector_store %arg7[%c0_6, %c0_7], %7 {strides = array<i32>} : memref<512x64xf32, #tpu.memory_space<vmem>>, vector<512x64xf32>,
    %c0_i32_8 = arith.constant 0 : i32
    %9 = arith.cmpi eq, %arg2, %c0_i32_8 : i32
    %10 = arith.extui %9 : i1 to i32
    %c0_i32_9 = arith.constant 0 : i32
    %11 = arith.cmpi ne, %10, %c0_i32_9 : i32
    scf.if %11 {
      %c0_10 = arith.constant 0 : index
      %c0_11 = arith.constant 0 : index
      %12 = vector.load %arg7[%c0_10, %c0_11] : memref<512x64xf32, #tpu.memory_space<vmem>>, vector<512x64xf32>
      %c0_12 = arith.constant 0 : index
      %c0_13 = arith.constant 0 : index
      %13 = vector.load %arg5[%c0_12, %c0_13] : memref<1x64xf32, #tpu.memory_space<vmem>>, vector<1x64xf32>
      %14 = vector.broadcast %13 : vector<1x64xf32> to vector<512x64xf32>
      %15 = arith.addf %12, %14 : vector<512x64xf32>
      %c0_14 = arith.constant 0 : index
      %c0_15 = arith.constant 0 : index
      %16 = vector.load %arg6[%c0_14, %c0_15] : memref<512x64xf32, #tpu.memory_space<vmem>>, vector<512x64xf32>
      tpu.vector_store %arg6[%c0_14, %c0_15], %15 {strides = array<i32>} : memref<512x64xf32, #tpu.memory_space<vmem>>, vector<512x64xf32>,
    } else {
    }
    return
  }
  func.func @transform_0(%arg0: i32, %arg1: i32, %arg2: i32) -> (i32, i32) {
    %c0_i32 = arith.constant 0 : i32
    return %arg0, %arg2 : i32, i32
  }
  func.func @transform_1(%arg0: i32, %arg1: i32, %arg2: i32) -> (i32, i32) {
    %c0_i32 = arith.constant 0 : i32
    return %arg2, %arg1 : i32, i32
  }
  func.func @transform_2(%arg0: i32, %arg1: i32, %arg2: i32) -> (i32, i32) {
    %c0_i32 = arith.constant 0 : i32
    %c0_i32_0 = arith.constant 0 : i32
    return %c0_i32, %arg1 : i32, i32
  }
  func.func @transform_3(%arg0: i32, %arg1: i32, %arg2: i32) -> (i32, i32) {
    %c0_i32 = arith.constant 0 : i32
    return %arg0, %arg1 : i32, i32
  }
}

</mosaic_0001>

<llo_original>
// kernel: _matmul_pallas.1
$region0: #{_matmul_pallas.1}
  #allocation0 [shape = 'u32[]', space=smem, size = 0x4, offset = 0x4, fixed_abs, tag = 'smem constant byte address 0x4 - core index']
  #allocation1 [shape = 'u32[144,128]{1,0:T(1,128)}', space=vmem, size = 0x12000, scoped, tag = 'internal scratch']
  #allocation2 [shape = 'f32[512,64]{1,0:T(8,128)}', space=vmem, size = 0x40000, scoped, tag = 'scratch operand']
  %s0 = inlined_call_operand.vmem [shape: bf16[1024,343], index: 0, kind: input, shape index: {}]
  %s1 = inlined_call_operand.vmem [shape: bf16[343,64], index: 1, kind: input, shape index: {}]
  %s2 = inlined_call_operand.vmem [shape: f32[1,64], index: 2, kind: input, shape index: {}]
  %s3 = inlined_call_operand.vmem [shape: f32[1024,64], index: 3, kind: output, shape index: {}]
  %s4 = sld [smem:[#allocation0]]
  $region53: #{_matmul_pallas.1} parent=0
    _
  %s6 = ssub.s32 1, %s4
  %s7 = scalar_select 0, %s6, %s4
  loop: start=0, step=1, limit=4
  $region2: #{_matmul_pallas.1} parent=0 // loop_pre_header
    _
  $region3: #{_matmul_pallas.1} parent=0 // loop_header
    %s9 = sphi 0, %s13
    %p10 = scmp.ge.s32.totalorder %s9, 4
    %s16 = sphi 0, %s35
    %s17 = sphi 0, %s31
    %s18 = sphi 0, %s27
    %s19 = sphi 0, %s16
    %s20 = sphi 0, %s17
    %s21 = sphi 0, %s18
    %s22 = sphi 0, %s19
    %s23 = sphi 0, %s20
    %s24 = sphi 0, %s21
    %s40 = sphi 0, %s42
    %s43 = sphi 0, %s40
    %s44 = sphi 0, %s43
    %s60 = sphi 0, %s44
    %s68 = sphi 0, %s70
    %s71 = sphi 0, %s68
    %s72 = sphi 0, %s71
    %s88 = sphi 0, %s72
    %s94 = sphi 0, %s96
    %s97 = sphi 0, %s94
    %s98 = sphi 0, %s97
    %s114 = sphi 0, %s98
    %s122 = sphi 0, %s124
    %s125 = sphi 0, %s122
    %s126 = sphi 0, %s125
    %s142 = sphi 0, %s126
  $region4: #{_matmul_pallas.1} parent=0 // loop_header_branch
    %12 = sbr.rel (%p10) target = $region8
  $region5: #{_matmul_pallas.1} parent=0 // loop_body
    %s14 = ssub.s32 %s9, 1
    %s15 = ssub.s32 %s9, 2
    %s25 = sadd.s32 1, %s18
    %p26 = scmp.ge.s32.totalorder %s25, 1
    %s27 = scalar_select %p26, 0, %s25
    %s28 = sadd.s32 1, %s17
    %s29 = scalar_select %p26, %s28, %s17
    %p30 = scmp.ge.s32.totalorder %s29, 1
    %s31 = scalar_select %p30, 0, %s29
    %s32 = sadd.s32 1, %s16
    %s33 = scalar_select %p30, %s32, %s16
    %p34 = scmp.ge.s32.totalorder %s33, 2
    %s35 = scalar_select %p34, 0, %s33
    %s36 = ssub.s32 %s16, %s35
    %s37 = ssub.s32 %s18, %s27
    %s38 = sor.u32 %s36, %s37
    %p39 = scmp.eq.s32.totalorder %s38, 0
    %s41 = sadd.s32 %s40, 1
    %s42 = scalar_select %p39, %s40, %s41
    %p45 = pneg %p39
    %p46 = scmp.eq.s32.totalorder %s9, 1
    %p47 = por %p45, %p46
    %p48 = scmp.ne.s32.totalorder %s40, %s43
    %p49 = scmp.eq.s32.totalorder %s9, 0
    %p50 = por %p48, %p49
    %p51 = scmp.ne.s32.totalorder %s40, %s43
    %p52 = scmp.eq.s32.totalorder %s14, 1
    %p53 = por %p51, %p52
    %p54 = scmp.ne.s32.totalorder %s43, %s44
    %p55 = scmp.eq.s32.totalorder %s14, 0
    %p56 = por %p54, %p55
    %p57 = scmp.ne.s32.totalorder %s43, %s44
    %p58 = scmp.eq.s32.totalorder %s15, 1
    %p59 = por %p57, %p58
    %p61 = scmp.ne.s32.totalorder %s44, %s60
    %p62 = scmp.eq.s32.totalorder %s15, 0
    %p63 = por %p61, %p62
    %s64 = ssub.s32 %s18, %s27
    %s65 = ssub.s32 %s17, %s31
    %s66 = sor.u32 %s64, %s65
    %p67 = scmp.eq.s32.totalorder %s66, 0
    %s69 = sadd.s32 %s68, 1
    %s70 = scalar_select %p67, %s68, %s69
    %p73 = pneg %p67
    %p74 = scmp.eq.s32.totalorder %s9, 1
    %p75 = por %p73, %p74
    %p76 = scmp.ne.s32.totalorder %s68, %s71
    %p77 = scmp.eq.s32.totalorder %s9, 0
    %p78 = por %p76, %p77
    %p79 = scmp.ne.s32.totalorder %s68, %s71
    %p80 = scmp.eq.s32.totalorder %s14, 1
    %p81 = por %p79, %p80
    %p82 = scmp.ne.s32.totalorder %s71, %s72
    %p83 = scmp.eq.s32.totalorder %s14, 0
    %p84 = por %p82, %p83
    %p85 = scmp.ne.s32.totalorder %s71, %s72
    %p86 = scmp.eq.s32.totalorder %s15, 1
    %p87 = por %p85, %p86
    %p89 = scmp.ne.s32.totalorder %s72, %s88
    %p90 = scmp.eq.s32.totalorder %s15, 0
    %p91 = por %p89, %p90
    %s92 = ssub.s32 %s17, %s31
    %p93 = scmp.eq.s32.totalorder %s92, 0
    %s95 = sadd.s32 %s94, 1
    %s96 = scalar_select %p93, %s94, %s95
    %p99 = pneg %p93
    %p100 = scmp.eq.s32.totalorder %s9, 1
    %p101 = por %p99, %p100
    %p102 = scmp.ne.s32.totalorder %s94, %s97
    %p103 = scmp.eq.s32.totalorder %s9, 0
    %p104 = por %p102, %p103
    %p105 = scmp.ne.s32.totalorder %s94, %s97
    %p106 = scmp.eq.s32.totalorder %s14, 1
    %p107 = por %p105, %p106
    %p108 = scmp.ne.s32.totalorder %s97, %s98
    %p109 = scmp.eq.s32.totalorder %s14, 0
    %p110 = por %p108, %p109
    %p111 = scmp.ne.s32.totalorder %s97, %s98
    %p112 = scmp.eq.s32.totalorder %s15, 1
    %p113 = por %p111, %p112
    %p115 = scmp.ne.s32.totalorder %s98, %s114
    %p116 = scmp.eq.s32.totalorder %s15, 0
    %p117 = por %p115, %p116
    %s118 = ssub.s32 %s16, %s35
    %s119 = ssub.s32 %s17, %s31
    %s120 = sor.u32 %s118, %s119
    %p121 = scmp.eq.s32.totalorder %s120, 0
    %s123 = sadd.s32 %s122, 1
    %s124 = scalar_select %p121, %s122, %s123
    %p127 = pneg %p121
    %p128 = scmp.eq.s32.totalorder %s9, 1
    %p129 = por %p127, %p128
    %p130 = scmp.ne.s32.totalorder %s122, %s125
    %p131 = scmp.eq.s32.totalorder %s9, 0
    %p132 = por %p130, %p131
    %p133 = scmp.ne.s32.totalorder %s122, %s125
    %p134 = scmp.eq.s32.totalorder %s14, 1
    %p135 = por %p133, %p134
    %p136 = scmp.ne.s32.totalorder %s125, %s126
    %p137 = scmp.eq.s32.totalorder %s14, 0
    %p138 = por %p136, %p137
    %p139 = scmp.ne.s32.totalorder %s125, %s126
    %p140 = scmp.eq.s32.totalorder %s15, 1
    %p141 = por %p139, %p140
    %p143 = scmp.ne.s32.totalorder %s126, %s142
    %p144 = scmp.eq.s32.totalorder %s15, 0
    %p145 = por %p143, %p144
    %p146 = scmp.le.s32.totalorder 1, %s9
    %p147 = scmp.lt.s32.totalorder %s9, 3
    %p148 = pnand %p146, %p147
    %p149 = pneg %p148
    // Predicated region
    $region9: #{_matmul_pallas.1} parent=5 // pred_check
      _
    $region10: #{_matmul_pallas.1} parent=5 // pred_check_branch
      %151 = sbr.rel (%p148) target = $region12
    $region11: #{_matmul_pallas.1} parent=5 // pred_region
      %s152 = ssub.s32 %s9, 1
      // Predicated region
      $region13: #{_matmul_pallas.1} parent=11 // pred_check
        %p153 = pneg %p84
      $region14: #{_matmul_pallas.1} parent=11 // pred_check_branch
        %155 = sbr.rel (%p153) target = $region16
      $region15: #{_matmul_pallas.1} parent=11 // pred_region
        %s156 = smul.u32 43, %s21
        %p157 = scmp.lt.s32.totalorder %s156, 42
        %s158 = scalar_select %p157, %s156, 42
        %p159 = scmp.lt.s32.totalorder %s20, 0
        %s160 = scalar_select %p159, %s20, 0
        %s161 = sadd.s32 %s160, %s158
        %s162 = smul.addr %s161, 4
        %s163 = scalar_lea.vmem %s1, %s162
        %s164 = smul.u32 43, %s21
      $region16: #{_matmul_pallas.1} parent=11 // pred_fallthru
        _
      // Predicated region
      $region17: #{_matmul_pallas.1} parent=11 // pred_check
        %p165 = pneg %p110
      $region18: #{_matmul_pallas.1} parent=11 // pred_check_branch
        %167 = sbr.rel (%p165) target = $region20
      $region19: #{_matmul_pallas.1} parent=11 // pred_region
        %p168 = scmp.lt.s32.totalorder %s20, 0
        %s169 = scalar_select %p168, %s20, 0
        %s170 = scalar_lea.vmem %s2, %s169
      $region20: #{_matmul_pallas.1} parent=11 // pred_fallthru
        _
    $region12: #{_matmul_pallas.1} parent=5 // pred_fallthru
      _
    %p171 = scmp.lt.s32.totalorder %s9, 2
    // Predicated region
    $region21: #{_matmul_pallas.1} parent=5 // pred_check
      %p172 = pneg %p171
    $region22: #{_matmul_pallas.1} parent=5 // pred_check_branch
      %174 = sbr.rel (%p172) target = $region24
    $region23: #{_matmul_pallas.1} parent=5 // pred_region
      // Predicated region
      $region25: #{_matmul_pallas.1} parent=23 // pred_check
        %p175 = pneg %p50
      $region26: #{_matmul_pallas.1} parent=23 // pred_check_branch
        %177 = sbr.rel (%p175) target = $region28
      $region27: #{_matmul_pallas.1} parent=23 // pred_region
        %s178 = smul.u32 64, %s16
        %s179 = smul.u32 3, %s18
        %p180 = scmp.lt.s32.totalorder %s178, 127
        %s181 = scalar_select %p180, %s178, 127
        %p182 = scmp.lt.s32.totalorder %s179, 2
        %s183 = scalar_select %p182, %s179, 2
        %s184 = smul.addr %s181, 3
        %s185 = sadd.s32 %s183, %s184
        %s186 = smul.addr %s185, 4
        %s187 = scalar_lea.vmem %s0, %s186
        %s188 = smul.u32 64, %s16
        %s189 = smul.u32 3, %s18
      $region28: #{_matmul_pallas.1} parent=23 // pred_fallthru
        _
    $region24: #{_matmul_pallas.1} parent=5 // pred_fallthru
      _
    %p190 = scmp.le.s32.totalorder 1, %s9
    %p191 = scmp.lt.s32.totalorder %s9, 3
    %p192 = pnand %p190, %p191
    %p193 = pneg %p192
    // Predicated region
    $region29: #{_matmul_pallas.1} parent=5 // pred_check
      _
    $region30: #{_matmul_pallas.1} parent=5 // pred_check_branch
      %195 = sbr.rel (%p192) target = $region32
    $region31: #{_matmul_pallas.1} parent=5 // pred_region
      %s196 = ssub.s32 %s9, 1
      %s197 = smul.u32 64, %s19
      %s198 = smul.u32 3, %s21
      %p199 = scmp.lt.s32.totalorder %s197, 127
      %s200 = scalar_select %p199, %s197, 127
      %p201 = scmp.lt.s32.totalorder %s198, 2
      %s202 = scalar_select %p201, %s198, 2
      %s203 = smul.addr %s200, 3
      %s204 = sadd.s32 %s202, %s203
      %s205 = smul.addr %s204, 4
      %s206 = scalar_lea.vmem %s0, %s205
      %p207 = pneg %p56
      %p208 = pneg %p53
      %s209 = smul.u32 43, %s21
      %p210 = scmp.lt.s32.totalorder %s209, 42
      %s211 = scalar_select %p210, %s209, 42
      %p212 = scmp.lt.s32.totalorder %s20, 0
      %s213 = scalar_select %p212, %s20, 0
      %s214 = sadd.s32 %s213, %s211
      %s215 = smul.addr %s214, 4
      %s216 = scalar_lea.vmem %s1, %s215
      %p217 = pneg %p84
      %p218 = pneg %p81
      %p219 = scmp.lt.s32.totalorder %s20, 0
      %s220 = scalar_select %p219, %s20, 0
      %s221 = scalar_lea.vmem %s2, %s220
      %p222 = pneg %p110
      %p223 = pneg %p107
      %p224 = pneg %p138
      %p225 = pneg %p135
      %s226 = smul.u32 64, %s19
      %p227 = scmp.lt.s32.totalorder %s226, 127
      %s228 = scalar_select %p227, %s226, 127
      %p229 = scmp.lt.s32.totalorder %s20, 0
      %s230 = scalar_select %p229, %s20, 0
      %s231 = sadd.s32 %s230, %s228
      %s232 = smul.addr %s231, 8
      %s233 = scalar_lea.vmem %s3, %s232
      %s234 = smul.u32 64, %s19
      %s235 = smul.u32 3, %s21
      %p236 = scmp.lt.s32.totalorder %s234, 127
      %s237 = scalar_select %p236, %s234, 127
      %p238 = scmp.lt.s32.totalorder %s235, 2
      %s239 = scalar_select %p238, %s235, 2
      %s240 = smul.addr %s237, 3
      %s241 = sadd.s32 %s239, %s240
      %s242 = smul.addr %s241, 4
      %s243 = scalar_lea.vmem %s0, %s242
      %s244 = smul.u32 64, %s19
      %s245 = smul.u32 3, %s21
      %s246 = smul.u32 43, %s21
      %p247 = scmp.lt.s32.totalorder %s246, 42
      %s248 = scalar_select %p247, %s246, 42
      %p249 = scmp.lt.s32.totalorder %s20, 0
      %s250 = scalar_select %p249, %s20, 0
      %s251 = sadd.s32 %s250, %s248
      %s252 = smul.addr %s251, 4
      %s253 = scalar_lea.vmem %s1, %s252
      %s254 = smul.u32 43, %s21
      %p255 = scmp.lt.s32.totalorder %s20, 0
      %s256 = scalar_select %p255, %s20, 0
      %s257 = scalar_lea.vmem %s2, %s256
      %s258 = smul.u32 64, %s19
      %p259 = scmp.lt.s32.totalorder %s258, 127
      %s260 = scalar_select %p259, %s258, 127
      %p261 = scmp.lt.s32.totalorder %s20, 0
      %s262 = scalar_select %p261, %s20, 0
      %s263 = sadd.s32 %s262, %s260
      %s264 = smul.addr %s263, 8
      %s265 = scalar_lea.vmem %s3, %s264
      %s266 = smul.u32 64, %s19
      %p268 = scmp.eq.s32.totalorder %s21, 0
      // Predicated region
      $region33: #{_matmul_pallas.1} parent=31 // pred_check
        %p269 = pneg %p268
      $region34: #{_matmul_pallas.1} parent=31 // pred_check_branch
        %271 = sbr.rel (%p269) target = $region36
      $region35: #{_matmul_pallas.1} parent=31 // pred_region
        %vm272 = vcmask 523264
        %273 = vst.msk [vmem:[#allocation2] sm:$0xff] %vm272, 0.0
        %274 = vst.msk [vmem:[#allocation2 + $0x8] sm:$0xff] %vm272, 0.0
        %275 = vst.msk [vmem:[#allocation2 + $0x10] sm:$0xff] %vm272, 0.0
        %276 = vst.msk [vmem:[#allocation2 + $0x18] sm:$0xff] %vm272, 0.0
        %277 = vst.msk [vmem:[#allocation2 + $0x20] sm:$0xff] %vm272, 0.0
        %278 = vst.msk [vmem:[#allocation2 + $0x28] sm:$0xff] %vm272, 0.0
        %279 = vst.msk [vmem:[#allocation2 + $0x30] sm:$0xff] %vm272, 0.0
        %280 = vst.msk [vmem:[#allocation2 + $0x38] sm:$0xff] %vm272, 0.0
        %281 = vst.msk [vmem:[#allocation2 + $0x40] sm:$0xff] %vm272, 0.0
        %282 = vst.msk [vmem:[#allocation2 + $0x48] sm:$0xff] %vm272, 0.0
        %283 = vst.msk [vmem:[#allocation2 + $0x50] sm:$0xff] %vm272, 0.0
        %284 = vst.msk [vmem:[#allocation2 + $0x58] sm:$0xff] %vm272, 0.0
        %285 = vst.msk [vmem:[#allocation2 + $0x60] sm:$0xff] %vm272, 0.0
        %286 = vst.msk [vmem:[#allocation2 + $0x68] sm:$0xff] %vm272, 0.0
        %287 = vst.msk [vmem:[#allocation2 + $0x70] sm:$0xff] %vm272, 0.0
        %288 = vst.msk [vmem:[#allocation2 + $0x78] sm:$0xff] %vm272, 0.0
        %289 = vst.msk [vmem:[#allocation2 + $0x80] sm:$0xff] %vm272, 0.0
        %290 = vst.msk [vmem:[#allocation2 + $0x88] sm:$0xff] %vm272, 0.0
        %291 = vst.msk [vmem:[#allocation2 + $0x90] sm:$0xff] %vm272, 0.0
        %292 = vst.msk [vmem:[#allocation2 + $0x98] sm:$0xff] %vm272, 0.0
        %293 = vst.msk [vmem:[#allocation2 + $0xa0] sm:$0xff] %vm272, 0.0
        %294 = vst.msk [vmem:[#allocation2 + $0xa8] sm:$0xff] %vm272, 0.0
        %295 = vst.msk [vmem:[#allocation2 + $0xb0] sm:$0xff] %vm272, 0.0
        %296 = vst.msk [vmem:[#allocation2 + $0xb8] sm:$0xff] %vm272, 0.0
        %297 = vst.msk [vmem:[#allocation2 + $0xc0] sm:$0xff] %vm272, 0.0
        %298 = vst.msk [vmem:[#allocation2 + $0xc8] sm:$0xff] %vm272, 0.0
        %299 = vst.msk [vmem:[#allocation2 + $0xd0] sm:$0xff] %vm272, 0.0
        %300 = vst.msk [vmem:[#allocation2 + $0xd8] sm:$0xff] %vm272, 0.0
        %301 = vst.msk [vmem:[#allocation2 + $0xe0] sm:$0xff] %vm272, 0.0
        %302 = vst.msk [vmem:[#allocation2 + $0xe8] sm:$0xff] %vm272, 0.0
        %303 = vst.msk [vmem:[#allocation2 + $0xf0] sm:$0xff] %vm272, 0.0
        %304 = vst.msk [vmem:[#allocation2 + $0xf8] sm:$0xff] %vm272, 0.0
        %305 = vst.msk [vmem:[#allocation2 + $0x100] sm:$0xff] %vm272, 0.0
        %306 = vst.msk [vmem:[#allocation2 + $0x108] sm:$0xff] %vm272, 0.0
        %307 = vst.msk [vmem:[#allocation2 + $0x110] sm:$0xff] %vm272, 0.0
        %308 = vst.msk [vmem:[#allocation2 + $0x118] sm:$0xff] %vm272, 0.0
        %309 = vst.msk [vmem:[#allocation2 + $0x120] sm:$0xff] %vm272, 0.0
        %310 = vst.msk [vmem:[#allocation2 + $0x128] sm:$0xff] %vm272, 0.0
        %311 = vst.msk [vmem:[#allocation2 + $0x130] sm:$0xff] %vm272, 0.0
        %312 = vst.msk [vmem:[#allocation2 + $0x138] sm:$0xff] %vm272, 0.0
        %313 = vst.msk [vmem:[#allocation2 + $0x140] sm:$0xff] %vm272, 0.0
        %314 = vst.msk [vmem:[#allocation2 + $0x148] sm:$0xff] %vm272, 0.0
        %315 = vst.msk [vmem:[#allocation2 + $0x150] sm:$0xff] %vm272, 0.0
        %316 = vst.msk [vmem:[#allocation2 + $0x158] sm:$0xff] %vm272, 0.0
        %317 = vst.msk [vmem:[#allocation2 + $0x160] sm:$0xff] %vm272, 0.0
        %318 = vst.msk [vmem:[#allocation2 + $0x168] sm:$0xff] %vm272, 0.0
        %319 = vst.msk [vmem:[#allocation2 + $0x170] sm:$0xff] %vm272, 0.0
        %320 = vst.msk [vmem:[#allocation2 + $0x178] sm:$0xff] %vm272, 0.0
        %321 = vst.msk [vmem:[#allocation2 + $0x180] sm:$0xff] %vm272, 0.0
        %322 = vst.msk [vmem:[#allocation2 + $0x188] sm:$0xff] %vm272, 0.0
        %323 = vst.msk [vmem:[#allocation2 + $0x190] sm:$0xff] %vm272, 0.0
        %324 = vst.msk [vmem:[#allocation2 + $0x198] sm:$0xff] %vm272, 0.0
        %325 = vst.msk [vmem:[#allocation2 + $0x1a0] sm:$0xff] %vm272, 0.0
        %326 = vst.msk [vmem:[#allocation2 + $0x1a8] sm:$0xff] %vm272, 0.0
        %327 = vst.msk [vmem:[#allocation2 + $0x1b0] sm:$0xff] %vm272, 0.0
        %328 = vst.msk [vmem:[#allocation2 + $0x1b8] sm:$0xff] %vm272, 0.0
        %329 = vst.msk [vmem:[#allocation2 + $0x1c0] sm:$0xff] %vm272, 0.0
        %330 = vst.msk [vmem:[#allocation2 + $0x1c8] sm:$0xff] %vm272, 0.0
        %331 = vst.msk [vmem:[#allocation2 + $0x1d0] sm:$0xff] %vm272, 0.0
        %332 = vst.msk [vmem:[#allocation2 + $0x1d8] sm:$0xff] %vm272, 0.0
        %333 = vst.msk [vmem:[#allocation2 + $0x1e0] sm:$0xff] %vm272, 0.0
        %334 = vst.msk [vmem:[#allocation2 + $0x1e8] sm:$0xff] %vm272, 0.0
        %335 = vst.msk [vmem:[#allocation2 + $0x1f0] sm:$0xff] %vm272, 0.0
        %336 = vst.msk [vmem:[#allocation2 + $0x1f8] sm:$0xff] %vm272, 0.0
      $region36: #{_matmul_pallas.1} parent=31 // pred_fallthru
        _
      %v337 = vld [vmem:[#allocation2] sm:$0xff]
      %v338 = vld [vmem:[#allocation2 + $0x8] sm:$0xff]
      %v339 = vld [vmem:[#allocation2 + $0x10] sm:$0xff]
      %v340 = vld [vmem:[#allocation2 + $0x18] sm:$0xff]
      %v341 = vld [vmem:[#allocation2 + $0x20] sm:$0xff]
      %v342 = vld [vmem:[#allocation2 + $0x28] sm:$0xff]
      %v343 = vld [vmem:[#allocation2 + $0x30] sm:$0xff]
      %v344 = vld [vmem:[#allocation2 + $0x38] sm:$0xff]
      %v345 = vld [vmem:[#allocation2 + $0x40] sm:$0xff]
      %v346 = vld [vmem:[#allocation2 + $0x48] sm:$0xff]
      %v347 = vld [vmem:[#allocation2 + $0x50] sm:$0xff]
      %v348 = vld [vmem:[#allocation2 + $0x58] sm:$0xff]
      %v349 = vld [vmem:[#allocation2 + $0x60] sm:$0xff]
      %v350 = vld [vmem:[#allocation2 + $0x68] sm:$0xff]
      %v351 = vld [vmem:[#allocation2 + $0x70] sm:$0xff]
      %v352 = vld [vmem:[#allocation2 + $0x78] sm:$0xff]
      %v353 = vld [vmem:[#allocation2 + $0x80] sm:$0xff]
      %v354 = vld [vmem:[#allocation2 + $0x88] sm:$0xff]
      %v355 = vld [vmem:[#allocation2 + $0x90] sm:$0xff]
      %v356 = vld [vmem:[#allocation2 + $0x98] sm:$0xff]
      %v357 = vld [vmem:[#allocation2 + $0xa0] sm:$0xff]
      %v358 = vld [vmem:[#allocation2 + $0xa8] sm:$0xff]
      %v359 = vld [vmem:[#allocation2 + $0xb0] sm:$0xff]
      %v360 = vld [vmem:[#allocation2 + $0xb8] sm:$0xff]
      %v361 = vld [vmem:[#allocation2 + $0xc0] sm:$0xff]
      %v362 = vld [vmem:[#allocation2 + $0xc8] sm:$0xff]
      %v363 = vld [vmem:[#allocation2 + $0xd0] sm:$0xff]
      %v364 = vld [vmem:[#allocation2 + $0xd8] sm:$0xff]
      %v365 = vld [vmem:[#allocation2 + $0xe0] sm:$0xff]
      %v366 = vld [vmem:[#allocation2 + $0xe8] sm:$0xff]
      %v367 = vld [vmem:[#allocation2 + $0xf0] sm:$0xff]
      %v368 = vld [vmem:[#allocation2 + $0xf8] sm:$0xff]
      %v369 = vld [vmem:[#allocation2 + $0x100] sm:$0xff]
      %v370 = vld [vmem:[#allocation2 + $0x108] sm:$0xff]
      %v371 = vld [vmem:[#allocation2 + $0x110] sm:$0xff]
      %v372 = vld [vmem:[#allocation2 + $0x118] sm:$0xff]
      %v373 = vld [vmem:[#allocation2 + $0x120] sm:$0xff]
      %v374 = vld [vmem:[#allocation2 + $0x128] sm:$0xff]
      %v375 = vld [vmem:[#allocation2 + $0x130] sm:$0xff]
      %v376 = vld [vmem:[#allocation2 + $0x138] sm:$0xff]
      %v377 = vld [vmem:[#allocation2 + $0x140] sm:$0xff]
      %v378 = vld [vmem:[#allocation2 + $0x148] sm:$0xff]
      %v379 = vld [vmem:[#allocation2 + $0x150] sm:$0xff]
      %v380 = vld [vmem:[#allocation2 + $0x158] sm:$0xff]
      %v381 = vld [vmem:[#allocation2 + $0x160] sm:$0xff]
      %v382 = vld [vmem:[#allocation2 + $0x168] sm:$0xff]
      %v383 = vld [vmem:[#allocation2 + $0x170] sm:$0xff]
      %v384 = vld [vmem:[#allocation2 + $0x178] sm:$0xff]
      %v385 = vld [vmem:[#allocation2 + $0x180] sm:$0xff]
      %v386 = vld [vmem:[#allocation2 + $0x188] sm:$0xff]
      %v387 = vld [vmem:[#allocation2 + $0x190] sm:$0xff]
      %v388 = vld [vmem:[#allocation2 + $0x198] sm:$0xff]
      %v389 = vld [vmem:[#allocation2 + $0x1a0] sm:$0xff]
      %v390 = vld [vmem:[#allocation2 + $0x1a8] sm:$0xff]
      %v391 = vld [vmem:[#allocation2 + $0x1b0] sm:$0xff]
      %v392 = vld [vmem:[#allocation2 + $0x1b8] sm:$0xff]
      %v393 = vld [vmem:[#allocation2 + $0x1c0] sm:$0xff]
      %v394 = vld [vmem:[#allocation2 + $0x1c8] sm:$0xff]
      %v395 = vld [vmem:[#allocation2 + $0x1d0] sm:$0xff]
      %v396 = vld [vmem:[#allocation2 + $0x1d8] sm:$0xff]
      %v397 = vld [vmem:[#allocation2 + $0x1e0] sm:$0xff]
      %v398 = vld [vmem:[#allocation2 + $0x1e8] sm:$0xff]
      %v399 = vld [vmem:[#allocation2 + $0x1f0] sm:$0xff]
      %v400 = vld [vmem:[#allocation2 + $0x1f8] sm:$0xff]
      %v401 = vld [vmem:[%s243] sm:$0xff]
      %v402 = vld [vmem:[%s243 + $0x8] sm:$0xf]
      %v403 = vld [vmem:[%s243 + $0xc] sm:$0xff]
      %v404 = vld [vmem:[%s243 + $0x14] sm:$0xf]
      %v405 = vld [vmem:[%s243 + $0x18] sm:$0xff]
      %v406 = vld [vmem:[%s243 + $0x20] sm:$0xf]
      %v407 = vld [vmem:[%s243 + $0x24] sm:$0xff]
      %v408 = vld [vmem:[%s243 + $0x2c] sm:$0xf]
      %v409 = vld [vmem:[%s243 + $0x30] sm:$0xff]
      %v410 = vld [vmem:[%s243 + $0x38] sm:$0xf]
      %v411 = vld [vmem:[%s243 + $0x3c] sm:$0xff]
      %v412 = vld [vmem:[%s243 + $0x44] sm:$0xf]
      %v413 = vld [vmem:[%s243 + $0x48] sm:$0xff]
      %v414 = vld [vmem:[%s243 + $0x50] sm:$0xf]
      %v415 = vld [vmem:[%s243 + $0x54] sm:$0xff]
      %v416 = vld [vmem:[%s243 + $0x5c] sm:$0xf]
      %v417 = vld [vmem:[%s243 + $0x60] sm:$0xff]
      %v418 = vld [vmem:[%s243 + $0x68] sm:$0xf]
      %v419 = vld [vmem:[%s243 + $0x6c] sm:$0xff]
      %v420 = vld [vmem:[%s243 + $0x74] sm:$0xf]
      %v421 = vld [vmem:[%s243 + $0x78] sm:$0xff]
      %v422 = vld [vmem:[%s243 + $0x80] sm:$0xf]
      %v423 = vld [vmem:[%s243 + $0x84] sm:$0xff]
      %v424 = vld [vmem:[%s243 + $0x8c] sm:$0xf]
      %v425 = vld [vmem:[%s243 + $0x90] sm:$0xff]
      %v426 = vld [vmem:[%s243 + $0x98] sm:$0xf]
      %v427 = vld [vmem:[%s243 + $0x9c] sm:$0xff]
      %v428 = vld [vmem:[%s243 + $0xa4] sm:$0xf]
      %v429 = vld [vmem:[%s243 + $0xa8] sm:$0xff]
      %v430 = vld [vmem:[%s243 + $0xb0] sm:$0xf]
      %v431 = vld [vmem:[%s243 + $0xb4] sm:$0xff]
      %v432 = vld [vmem:[%s243 + $0xbc] sm:$0xf]
      %v433 = vld [vmem:[%s243 + $0xc0] sm:$0xff]
      %v434 = vld [vmem:[%s243 + $0xc8] sm:$0xf]
      %v435 = vld [vmem:[%s243 + $0xcc] sm:$0xff]
      %v436 = vld [vmem:[%s243 + $0xd4] sm:$0xf]
      %v437 = vld [vmem:[%s243 + $0xd8] sm:$0xff]
      %v438 = vld [vmem:[%s243 + $0xe0] sm:$0xf]
      %v439 = vld [vmem:[%s243 + $0xe4] sm:$0xff]
      %v440 = vld [vmem:[%s243 + $0xec] sm:$0xf]
      %v441 = vld [vmem:[%s243 + $0xf0] sm:$0xff]
      %v442 = vld [vmem:[%s243 + $0xf8] sm:$0xf]
      %v443 = vld [vmem:[%s243 + $0xfc] sm:$0xff]
      %v444 = vld [vmem:[%s243 + $0x104] sm:$0xf]
      %v445 = vld [vmem:[%s243 + $0x108] sm:$0xff]
      %v446 = vld [vmem:[%s243 + $0x110] sm:$0xf]
      %v447 = vld [vmem:[%s243 + $0x114] sm:$0xff]
      %v448 = vld [vmem:[%s243 + $0x11c] sm:$0xf]
      %v449 = vld [vmem:[%s243 + $0x120] sm:$0xff]
      %v450 = vld [vmem:[%s243 + $0x128] sm:$0xf]
      %v451 = vld [vmem:[%s243 + $0x12c] sm:$0xff]
      %v452 = vld [vmem:[%s243 + $0x134] sm:$0xf]
      %v453 = vld [vmem:[%s243 + $0x138] sm:$0xff]
      %v454 = vld [vmem:[%s243 + $0x140] sm:$0xf]
      %v455 = vld [vmem:[%s243 + $0x144] sm:$0xff]
      %v456 = vld [vmem:[%s243 + $0x14c] sm:$0xf]
      %v457 = vld [vmem:[%s243 + $0x150] sm:$0xff]
      %v458 = vld [vmem:[%s243 + $0x158] sm:$0xf]
      %v459 = vld [vmem:[%s243 + $0x15c] sm:$0xff]
      %v460 = vld [vmem:[%s243 + $0x164] sm:$0xf]
      %v461 = vld [vmem:[%s243 + $0x168] sm:$0xff]
      %v462 = vld [vmem:[%s243 + $0x170] sm:$0xf]
      %v463 = vld [vmem:[%s243 + $0x174] sm:$0xff]
      %v464 = vld [vmem:[%s243 + $0x17c] sm:$0xf]
      %v465 = vld [vmem:[%s243 + $0x180] sm:$0xff]
      %v466 = vld [vmem:[%s243 + $0x188] sm:$0xf]
      %v467 = vld [vmem:[%s243 + $0x18c] sm:$0xff]
      %v468 = vld [vmem:[%s243 + $0x194] sm:$0xf]
      %v469 = vld [vmem:[%s243 + $0x198] sm:$0xff]
      %v470 = vld [vmem:[%s243 + $0x1a0] sm:$0xf]
      %v471 = vld [vmem:[%s243 + $0x1a4] sm:$0xff]
      %v472 = vld [vmem:[%s243 + $0x1ac] sm:$0xf]
      %v473 = vld [vmem:[%s243 + $0x1b0] sm:$0xff]
      %v474 = vld [vmem:[%s243 + $0x1b8] sm:$0xf]
      %v475 = vld [vmem:[%s243 + $0x1bc] sm:$0xff]
      %v476 = vld [vmem:[%s243 + $0x1c4] sm:$0xf]
      %v477 = vld [vmem:[%s243 + $0x1c8] sm:$0xff]
      %v478 = vld [vmem:[%s243 + $0x1d0] sm:$0xf]
      %v479 = vld [vmem:[%s243 + $0x1d4] sm:$0xff]
      %v480 = vld [vmem:[%s243 + $0x1dc] sm:$0xf]
      %v481 = vld [vmem:[%s243 + $0x1e0] sm:$0xff]
      %v482 = vld [vmem:[%s243 + $0x1e8] sm:$0xf]
      %v483 = vld [vmem:[%s243 + $0x1ec] sm:$0xff]
      %v484 = vld [vmem:[%s243 + $0x1f4] sm:$0xf]
      %v485 = vld [vmem:[%s243 + $0x1f8] sm:$0xff]
      %v486 = vld [vmem:[%s243 + $0x200] sm:$0xf]
      %v487 = vld [vmem:[%s243 + $0x204] sm:$0xff]
      %v488 = vld [vmem:[%s243 + $0x20c] sm:$0xf]
      %v489 = vld [vmem:[%s243 + $0x210] sm:$0xff]
      %v490 = vld [vmem:[%s243 + $0x218] sm:$0xf]
      %v491 = vld [vmem:[%s243 + $0x21c] sm:$0xff]
      %v492 = vld [vmem:[%s243 + $0x224] sm:$0xf]
      %v493 = vld [vmem:[%s243 + $0x228] sm:$0xff]
      %v494 = vld [vmem:[%s243 + $0x230] sm:$0xf]
      %v495 = vld [vmem:[%s243 + $0x234] sm:$0xff]
      %v496 = vld [vmem:[%s243 + $0x23c] sm:$0xf]
      %v497 = vld [vmem:[%s243 + $0x240] sm:$0xff]
      %v498 = vld [vmem:[%s243 + $0x248] sm:$0xf]
      %v499 = vld [vmem:[%s243 + $0x24c] sm:$0xff]
      %v500 = vld [vmem:[%s243 + $0x254] sm:$0xf]
      %v501 = vld [vmem:[%s243 + $0x258] sm:$0xff]
      %v502 = vld [vmem:[%s243 + $0x260] sm:$0xf]
      %v503 = vld [vmem:[%s243 + $0x264] sm:$0xff]
      %v504 = vld [vmem:[%s243 + $0x26c] sm:$0xf]
      %v505 = vld [vmem:[%s243 + $0x270] sm:$0xff]
      %v506 = vld [vmem:[%s243 + $0x278] sm:$0xf]
      %v507 = vld [vmem:[%s243 + $0x27c] sm:$0xff]
      %v508 = vld [vmem:[%s243 + $0x284] sm:$0xf]
      %v509 = vld [vmem:[%s243 + $0x288] sm:$0xff]
      %v510 = vld [vmem:[%s243 + $0x290] sm:$0xf]
      %v511 = vld [vmem:[%s243 + $0x294] sm:$0xff]
      %v512 = vld [vmem:[%s243 + $0x29c] sm:$0xf]
      %v513 = vld [vmem:[%s243 + $0x2a0] sm:$0xff]
      %v514 = vld [vmem:[%s243 + $0x2a8] sm:$0xf]
      %v515 = vld [vmem:[%s243 + $0x2ac] sm:$0xff]
      %v516 = vld [vmem:[%s243 + $0x2b4] sm:$0xf]
      %v517 = vld [vmem:[%s243 + $0x2b8] sm:$0xff]
      %v518 = vld [vmem:[%s243 + $0x2c0] sm:$0xf]
      %v519 = vld [vmem:[%s243 + $0x2c4] sm:$0xff]
      %v520 = vld [vmem:[%s243 + $0x2cc] sm:$0xf]
      %v521 = vld [vmem:[%s243 + $0x2d0] sm:$0xff]
      %v522 = vld [vmem:[%s243 + $0x2d8] sm:$0xf]
      %v523 = vld [vmem:[%s243 + $0x2dc] sm:$0xff]
      %v524 = vld [vmem:[%s243 + $0x2e4] sm:$0xf]
      %v525 = vld [vmem:[%s243 + $0x2e8] sm:$0xff]
      %v526 = vld [vmem:[%s243 + $0x2f0] sm:$0xf]
      %v527 = vld [vmem:[%s243 + $0x2f4] sm:$0xff]
      %v528 = vld [vmem:[%s243 + $0x2fc] sm:$0xf]
      %v529 = vld [vmem:[%s253] sm:$0xf]
      %v530 = vld [vmem:[%s253 + $0x4] sm:$0xf]
      %v531 = vld [vmem:[%s253 + $0x8] sm:$0xf]
      %v532 = vld [vmem:[%s253 + $0xc] sm:$0xf]
      %v533 = vld [vmem:[%s253 + $0x10] sm:$0xf]
      %v534 = vld [vmem:[%s253 + $0x14] sm:$0xf]
      %v535 = vld [vmem:[%s253 + $0x18] sm:$0xf]
      %v536 = vld [vmem:[%s253 + $0x1c] sm:$0xf]
      %v537 = vld [vmem:[%s253 + $0x20] sm:$0xf]
      %v538 = vld [vmem:[%s253 + $0x24] sm:$0xf]
      %v539 = vld [vmem:[%s253 + $0x28] sm:$0xf]
      %v540 = vld [vmem:[%s253 + $0x2c] sm:$0xf]
      %v541 = vld [vmem:[%s253 + $0x30] sm:$0xf]
      %v542 = vld [vmem:[%s253 + $0x34] sm:$0xf]
      %v543 = vld [vmem:[%s253 + $0x38] sm:$0xf]
      %v544 = vld [vmem:[%s253 + $0x3c] sm:$0xf]
      %v545 = vld [vmem:[%s253 + $0x40] sm:$0xf]
      %v546 = vld [vmem:[%s253 + $0x44] sm:$0xf]
      %v547 = vld [vmem:[%s253 + $0x48] sm:$0xf]
      %v548 = vld [vmem:[%s253 + $0x4c] sm:$0xf]
      %v549 = vld [vmem:[%s253 + $0x50] sm:$0xf]
      %v550 = vld [vmem:[%s253 + $0x54] sm:$0xf]
      %v551 = vld [vmem:[%s253 + $0x58] sm:$0xf]
      %v552 = vld [vmem:[%s253 + $0x5c] sm:$0xf]
      %v553 = vld [vmem:[%s253 + $0x60] sm:$0xf]
      %v554 = vld [vmem:[%s253 + $0x64] sm:$0xf]
      %v555 = vld [vmem:[%s253 + $0x68] sm:$0xf]
      %v556 = vld [vmem:[%s253 + $0x6c] sm:$0xf]
      %v557 = vld [vmem:[%s253 + $0x70] sm:$0xf]
      %v558 = vld [vmem:[%s253 + $0x74] sm:$0xf]
      %v559 = vld [vmem:[%s253 + $0x78] sm:$0xf]
      %v560 = vld [vmem:[%s253 + $0x7c] sm:$0xf]
      %v561 = vld [vmem:[%s253 + $0x80] sm:$0xf]
      %v562 = vld [vmem:[%s253 + $0x84] sm:$0xf]
      %v563 = vld [vmem:[%s253 + $0x88] sm:$0xf]
      %v564 = vld [vmem:[%s253 + $0x8c] sm:$0xf]
      %v565 = vld [vmem:[%s253 + $0x90] sm:$0xf]
      %v566 = vld [vmem:[%s253 + $0x94] sm:$0xf]
      %v567 = vld [vmem:[%s253 + $0x98] sm:$0xf]
      %v568 = vld [vmem:[%s253 + $0x9c] sm:$0xf]
      %v569 = vld [vmem:[%s253 + $0xa0] sm:$0xf]
      %v570 = vld [vmem:[%s253 + $0xa4] sm:$0xf]
      %v571 = vld [vmem:[%s253 + $0xa8] sm:$0xf]
      %v700 = vunpack.c.l.b16 %v401
      %v701 = vunpack.c.h.b16 %v401
      %v702 = vunpack.c.l.b16 %v402
      %v703 = vunpack.c.l.b16 %v403
      %v704 = vunpack.c.h.b16 %v403
      %v705 = vunpack.c.l.b16 %v404
      %v706 = vunpack.c.l.b16 %v405
      %v707 = vunpack.c.h.b16 %v405
      %v708 = vunpack.c.l.b16 %v406
      %v709 = vunpack.c.l.b16 %v407
      %v710 = vunpack.c.h.b16 %v407
      %v711 = vunpack.c.l.b16 %v408
      %v712 = vunpack.c.l.b16 %v409
      %v713 = vunpack.c.h.b16 %v409
      %v714 = vunpack.c.l.b16 %v410
      %v715 = vunpack.c.l.b16 %v411
      %v716 = vunpack.c.h.b16 %v411
      %v717 = vunpack.c.l.b16 %v412
      %v718 = vunpack.c.l.b16 %v413
      %v719 = vunpack.c.h.b16 %v413
      %v720 = vunpack.c.l.b16 %v414
      %v721 = vunpack.c.l.b16 %v415
      %v722 = vunpack.c.h.b16 %v415
      %v723 = vunpack.c.l.b16 %v416
      %v724 = vunpack.c.l.b16 %v417
      %v725 = vunpack.c.h.b16 %v417
      %v726 = vunpack.c.l.b16 %v418
      %v727 = vunpack.c.l.b16 %v419
      %v728 = vunpack.c.h.b16 %v419
      %v729 = vunpack.c.l.b16 %v420
      %v730 = vunpack.c.l.b16 %v421
      %v731 = vunpack.c.h.b16 %v421
      %v732 = vunpack.c.l.b16 %v422
      %v733 = vunpack.c.l.b16 %v423
      %v734 = vunpack.c.h.b16 %v423
      %v735 = vunpack.c.l.b16 %v424
      %v736 = vunpack.c.l.b16 %v425
      %v737 = vunpack.c.h.b16 %v425
      %v738 = vunpack.c.l.b16 %v426
      %v739 = vunpack.c.l.b16 %v427
      %v740 = vunpack.c.h.b16 %v427
      %v741 = vunpack.c.l.b16 %v428
      %v742 = vunpack.c.l.b16 %v429
      %v743 = vunpack.c.h.b16 %v429
      %v744 = vunpack.c.l.b16 %v430
      %v745 = vunpack.c.l.b16 %v431
      %v746 = vunpack.c.h.b16 %v431
      %v747 = vunpack.c.l.b16 %v432
      %v748 = vunpack.c.l.b16 %v433
      %v749 = vunpack.c.h.b16 %v433
      %v750 = vunpack.c.l.b16 %v434
      %v751 = vunpack.c.l.b16 %v435
      %v752 = vunpack.c.h.b16 %v435
      %v753 = vunpack.c.l.b16 %v436
      %v754 = vunpack.c.l.b16 %v437
      %v755 = vunpack.c.h.b16 %v437
      %v756 = vunpack.c.l.b16 %v438
      %v757 = vunpack.c.l.b16 %v439
      %v758 = vunpack.c.h.b16 %v439
      %v759 = vunpack.c.l.b16 %v440
      %v760 = vunpack.c.l.b16 %v441
      %v761 = vunpack.c.h.b16 %v441
      %v762 = vunpack.c.l.b16 %v442
      %v763 = vunpack.c.l.b16 %v443
      %v764 = vunpack.c.h.b16 %v443
      %v765 = vunpack.c.l.b16 %v444
      %v766 = vunpack.c.l.b16 %v445
      %v767 = vunpack.c.h.b16 %v445
      %v768 = vunpack.c.l.b16 %v446
      %v769 = vunpack.c.l.b16 %v447
      %v770 = vunpack.c.h.b16 %v447
      %v771 = vunpack.c.l.b16 %v448
      %v772 = vunpack.c.l.b16 %v449
      %v773 = vunpack.c.h.b16 %v449
      %v774 = vunpack.c.l.b16 %v450
      %v775 = vunpack.c.l.b16 %v451
      %v776 = vunpack.c.h.b16 %v451
      %v777 = vunpack.c.l.b16 %v452
      %v778 = vunpack.c.l.b16 %v453
      %v779 = vunpack.c.h.b16 %v453
      %v780 = vunpack.c.l.b16 %v454
      %v781 = vunpack.c.l.b16 %v455
      %v782 = vunpack.c.h.b16 %v455
      %v783 = vunpack.c.l.b16 %v456
      %v784 = vunpack.c.l.b16 %v457
      %v785 = vunpack.c.h.b16 %v457
      %v786 = vunpack.c.l.b16 %v458
      %v787 = vunpack.c.l.b16 %v459
      %v788 = vunpack.c.h.b16 %v459
      %v789 = vunpack.c.l.b16 %v460
      %v790 = vunpack.c.l.b16 %v461
      %v791 = vunpack.c.h.b16 %v461
      %v792 = vunpack.c.l.b16 %v462
      %v793 = vunpack.c.l.b16 %v463
      %v794 = vunpack.c.h.b16 %v463
      %v795 = vunpack.c.l.b16 %v464
      %v796 = vunpack.c.l.b16 %v465
      %v797 = vunpack.c.h.b16 %v465
      %v798 = vunpack.c.l.b16 %v466
      %v799 = vunpack.c.l.b16 %v467
      %v800 = vunpack.c.h.b16 %v467
      %v801 = vunpack.c.l.b16 %v468
      %v802 = vunpack.c.l.b16 %v469
      %v803 = vunpack.c.h.b16 %v469
      %v804 = vunpack.c.l.b16 %v470
      %v805 = vunpack.c.l.b16 %v471
      %v806 = vunpack.c.h.b16 %v471
      %v807 = vunpack.c.l.b16 %v472
      %v808 = vunpack.c.l.b16 %v473
      %v809 = vunpack.c.h.b16 %v473
      %v810 = vunpack.c.l.b16 %v474
      %v811 = vunpack.c.l.b16 %v475
      %v812 = vunpack.c.h.b16 %v475
      %v813 = vunpack.c.l.b16 %v476
      %v814 = vunpack.c.l.b16 %v477
      %v815 = vunpack.c.h.b16 %v477
      %v816 = vunpack.c.l.b16 %v478
      %v817 = vunpack.c.l.b16 %v479
      %v818 = vunpack.c.h.b16 %v479
      %v819 = vunpack.c.l.b16 %v480
      %v820 = vunpack.c.l.b16 %v481
      %v821 = vunpack.c.h.b16 %v481
      %v822 = vunpack.c.l.b16 %v482
      %v823 = vunpack.c.l.b16 %v483
      %v824 = vunpack.c.h.b16 %v483
      %v825 = vunpack.c.l.b16 %v484
      %v826 = vunpack.c.l.b16 %v485
      %v827 = vunpack.c.h.b16 %v485
      %v828 = vunpack.c.l.b16 %v486
      %v829 = vunpack.c.l.b16 %v487
      %v830 = vunpack.c.h.b16 %v487
      %v831 = vunpack.c.l.b16 %v488
      %v832 = vunpack.c.l.b16 %v489
      %v833 = vunpack.c.h.b16 %v489
      %v834 = vunpack.c.l.b16 %v490
      %v835 = vunpack.c.l.b16 %v491
      %v836 = vunpack.c.h.b16 %v491
      %v837 = vunpack.c.l.b16 %v492
      %v838 = vunpack.c.l.b16 %v493
      %v839 = vunpack.c.h.b16 %v493
      %v840 = vunpack.c.l.b16 %v494
      %v841 = vunpack.c.l.b16 %v495
      %v842 = vunpack.c.h.b16 %v495
      %v843 = vunpack.c.l.b16 %v496
      %v844 = vunpack.c.l.b16 %v497
      %v845 = vunpack.c.h.b16 %v497
      %v846 = vunpack.c.l.b16 %v498
      %v847 = vunpack.c.l.b16 %v499
      %v848 = vunpack.c.h.b16 %v499
      %v849 = vunpack.c.l.b16 %v500
      %v850 = vunpack.c.l.b16 %v501
      %v851 = vunpack.c.h.b16 %v501
      %v852 = vunpack.c.l.b16 %v502
      %v853 = vunpack.c.l.b16 %v503
      %v854 = vunpack.c.h.b16 %v503
      %v855 = vunpack.c.l.b16 %v504
      %v856 = vunpack.c.l.b16 %v505
      %v857 = vunpack.c.h.b16 %v505
      %v858 = vunpack.c.l.b16 %v506
      %v859 = vunpack.c.l.b16 %v507
      %v860 = vunpack.c.h.b16 %v507
      %v861 = vunpack.c.l.b16 %v508
      %v862 = vunpack.c.l.b16 %v509
      %v863 = vunpack.c.h.b16 %v509
      %v864 = vunpack.c.l.b16 %v510
      %v865 = vunpack.c.l.b16 %v511
      %v866 = vunpack.c.h.b16 %v511
      %v867 = vunpack.c.l.b16 %v512
      %v868 = vunpack.c.l.b16 %v513
      %v869 = vunpack.c.h.b16 %v513
      %v870 = vunpack.c.l.b16 %v514
      %v871 = vunpack.c.l.b16 %v515
      %v872 = vunpack.c.h.b16 %v515
      %v873 = vunpack.c.l.b16 %v516
      %v874 = vunpack.c.l.b16 %v517
      %v875 = vunpack.c.h.b16 %v517
      %v876 = vunpack.c.l.b16 %v518
      %v877 = vunpack.c.l.b16 %v519
      %v878 = vunpack.c.h.b16 %v519
      %v879 = vunpack.c.l.b16 %v520
      %v880 = vunpack.c.l.b16 %v521
      %v881 = vunpack.c.h.b16 %v521
      %v882 = vunpack.c.l.b16 %v522
      %v883 = vunpack.c.l.b16 %v523
      %v884 = vunpack.c.h.b16 %v523
      %v885 = vunpack.c.l.b16 %v524
      %v886 = vunpack.c.l.b16 %v525
      %v887 = vunpack.c.h.b16 %v525
      %v888 = vunpack.c.l.b16 %v526
      %v889 = vunpack.c.l.b16 %v527
      %v890 = vunpack.c.h.b16 %v527
      %v891 = vunpack.c.l.b16 %v528
      %v892 = vpack.c.b16 %v703, %v700
      %v893 = vpack.c.b16 %v704, %v701
      %v894 = vpack.c.b16 %v705, %v702
      %v895 = vpack.c.b16 %v709, %v706
      %v896 = vpack.c.b16 %v710, %v707
      %v897 = vpack.c.b16 %v711, %v708
      %v898 = vpack.c.b16 %v715, %v712
      %v899 = vpack.c.b16 %v716, %v713
      %v900 = vpack.c.b16 %v717, %v714
      %v901 = vpack.c.b16 %v721, %v718
      %v902 = vpack.c.b16 %v722, %v719
      %v903 = vpack.c.b16 %v723, %v720
      %v904 = vpack.c.b16 %v727, %v724
      %v905 = vpack.c.b16 %v728, %v725
      %v906 = vpack.c.b16 %v729, %v726
      %v907 = vpack.c.b16 %v733, %v730
      %v908 = vpack.c.b16 %v734, %v731
      %v909 = vpack.c.b16 %v735, %v732
      %v910 = vpack.c.b16 %v739, %v736
      %v911 = vpack.c.b16 %v740, %v737
      %v912 = vpack.c.b16 %v741, %v738
      %v913 = vpack.c.b16 %v745, %v742
      %v914 = vpack.c.b16 %v746, %v743
      %v915 = vpack.c.b16 %v747, %v744
      %v916 = vpack.c.b16 %v751, %v748
      %v917 = vpack.c.b16 %v752, %v749
      %v918 = vpack.c.b16 %v753, %v750
      %v919 = vpack.c.b16 %v757, %v754
      %v920 = vpack.c.b16 %v758, %v755
      %v921 = vpack.c.b16 %v759, %v756
      %v922 = vpack.c.b16 %v763, %v760
      %v923 = vpack.c.b16 %v764, %v761
      %v924 = vpack.c.b16 %v765, %v762
      %v925 = vpack.c.b16 %v769, %v766
      %v926 = vpack.c.b16 %v770, %v767
      %v927 = vpack.c.b16 %v771, %v768
      %v928 = vpack.c.b16 %v775, %v772
      %v929 = vpack.c.b16 %v776, %v773
      %v930 = vpack.c.b16 %v777, %v774
      %v931 = vpack.c.b16 %v781, %v778
      %v932 = vpack.c.b16 %v782, %v779
      %v933 = vpack.c.b16 %v783, %v780
      %v934 = vpack.c.b16 %v787, %v784
      %v935 = vpack.c.b16 %v788, %v785
      %v936 = vpack.c.b16 %v789, %v786
      %v937 = vpack.c.b16 %v793, %v790
      %v938 = vpack.c.b16 %v794, %v791
      %v939 = vpack.c.b16 %v795, %v792
      %v940 = vpack.c.b16 %v799, %v796
      %v941 = vpack.c.b16 %v800, %v797
      %v942 = vpack.c.b16 %v801, %v798
      %v943 = vpack.c.b16 %v805, %v802
      %v944 = vpack.c.b16 %v806, %v803
      %v945 = vpack.c.b16 %v807, %v804
      %v946 = vpack.c.b16 %v811, %v808
      %v947 = vpack.c.b16 %v812, %v809
      %v948 = vpack.c.b16 %v813, %v810
      %v949 = vpack.c.b16 %v817, %v814
      %v950 = vpack.c.b16 %v818, %v815
      %v951 = vpack.c.b16 %v819, %v816
      %v952 = vpack.c.b16 %v823, %v820
      %v953 = vpack.c.b16 %v824, %v821
      %v954 = vpack.c.b16 %v825, %v822
      %v955 = vpack.c.b16 %v829, %v826
      %v956 = vpack.c.b16 %v830, %v827
      %v957 = vpack.c.b16 %v831, %v828
      %v958 = vpack.c.b16 %v835, %v832
      %v959 = vpack.c.b16 %v836, %v833
      %v960 = vpack.c.b16 %v837, %v834
      %v961 = vpack.c.b16 %v841, %v838
      %v962 = vpack.c.b16 %v842, %v839
      %v963 = vpack.c.b16 %v843, %v840
      %v964 = vpack.c.b16 %v847, %v844
      %v965 = vpack.c.b16 %v848, %v845
      %v966 = vpack.c.b16 %v849, %v846
      %v967 = vpack.c.b16 %v853, %v850
      %v968 = vpack.c.b16 %v854, %v851
      %v969 = vpack.c.b16 %v855, %v852
      %v970 = vpack.c.b16 %v859, %v856
      %v971 = vpack.c.b16 %v860, %v857
      %v972 = vpack.c.b16 %v861, %v858
      %v973 = vpack.c.b16 %v865, %v862
      %v974 = vpack.c.b16 %v866, %v863
      %v975 = vpack.c.b16 %v867, %v864
      %v976 = vpack.c.b16 %v871, %v868
      %v977 = vpack.c.b16 %v872, %v869
      %v978 = vpack.c.b16 %v873, %v870
      %v979 = vpack.c.b16 %v877, %v874
      %v980 = vpack.c.b16 %v878, %v875
      %v981 = vpack.c.b16 %v879, %v876
      %v982 = vpack.c.b16 %v883, %v880
      %v983 = vpack.c.b16 %v884, %v881
      %v984 = vpack.c.b16 %v885, %v882
      %v985 = vpack.c.b16 %v889, %v886
      %v986 = vpack.c.b16 %v890, %v887
      %v987 = vpack.c.b16 %v891, %v888
      %v1095 = vunpack.c.l.b16 %v529
      %v1096 = vunpack.c.l.b16 %v530
      %v1097 = vunpack.c.l.b16 %v531
      %v1098 = vunpack.c.l.b16 %v532
      %v1099 = vunpack.c.l.b16 %v533
      %v1100 = vunpack.c.l.b16 %v534
      %v1101 = vunpack.c.l.b16 %v535
      %v1102 = vunpack.c.l.b16 %v536
      %v1103 = vunpack.c.l.b16 %v537
      %v1104 = vunpack.c.l.b16 %v538
      %v1105 = vunpack.c.l.b16 %v539
      %v1106 = vunpack.c.l.b16 %v540
      %v1107 = vunpack.c.l.b16 %v541
      %v1108 = vunpack.c.l.b16 %v542
      %v1109 = vunpack.c.l.b16 %v543
      %v1110 = vunpack.c.l.b16 %v544
      %v1111 = vunpack.c.l.b16 %v545
      %v1112 = vunpack.c.l.b16 %v546
      %v1113 = vunpack.c.l.b16 %v547
      %v1114 = vunpack.c.l.b16 %v548
      %v1115 = vunpack.c.l.b16 %v549
      %v1116 = vunpack.c.l.b16 %v550
      %v1117 = vunpack.c.l.b16 %v551
      %v1118 = vunpack.c.l.b16 %v552
      %v1119 = vunpack.c.l.b16 %v553
      %v1120 = vunpack.c.l.b16 %v554
      %v1121 = vunpack.c.l.b16 %v555
      %v1122 = vunpack.c.l.b16 %v556
      %v1123 = vunpack.c.l.b16 %v557
      %v1124 = vunpack.c.l.b16 %v558
      %v1125 = vunpack.c.l.b16 %v559
      %v1126 = vunpack.c.l.b16 %v560
      %v1127 = vunpack.c.l.b16 %v561
      %v1128 = vunpack.c.l.b16 %v562
      %v1129 = vunpack.c.l.b16 %v563
      %v1130 = vunpack.c.l.b16 %v564
      %v1131 = vunpack.c.l.b16 %v565
      %v1132 = vunpack.c.l.b16 %v566
      %v1133 = vunpack.c.l.b16 %v567
      %v1134 = vunpack.c.l.b16 %v568
      %v1135 = vunpack.c.l.b16 %v569
      %v1136 = vunpack.c.l.b16 %v570
      %v1137 = vunpack.c.l.b16 %v571
      %v1138 = vpack.c.b16 %v1096, %v1095
      %v1139 = vpack.c.b16 %v1098, %v1097
      %v1140 = vpack.c.b16 %v1100, %v1099
      %v1141 = vpack.c.b16 %v1102, %v1101
      %v1142 = vpack.c.b16 %v1104, %v1103
      %v1143 = vpack.c.b16 %v1106, %v1105
      %v1144 = vpack.c.b16 %v1108, %v1107
      %v1145 = vpack.c.b16 %v1110, %v1109
      %v1146 = vpack.c.b16 %v1112, %v1111
      %v1147 = vpack.c.b16 %v1114, %v1113
      %v1148 = vpack.c.b16 %v1116, %v1115
      %v1149 = vpack.c.b16 %v1118, %v1117
      %v1150 = vpack.c.b16 %v1120, %v1119
      %v1151 = vpack.c.b16 %v1122, %v1121
      %v1152 = vpack.c.b16 %v1124, %v1123
      %v1153 = vpack.c.b16 %v1126, %v1125
      %v1154 = vpack.c.b16 %v1128, %v1127
      %v1155 = vpack.c.b16 %v1130, %v1129
      %v1156 = vpack.c.b16 %v1132, %v1131
      %v1157 = vpack.c.b16 %v1134, %v1133
      %v1158 = vpack.c.b16 %v1136, %v1135
      %v1159 = vpack.c.b16 %v1137, %v1137
      %vm1181 = vcmask 711680
      %v1183 = vsel %vm1181, %v894, 0
      %v1186 = vsel %vm1181, %v897, 0
      %v1189 = vsel %vm1181, %v900, 0
      %v1192 = vsel %vm1181, %v903, 0
      %v1195 = vsel %vm1181, %v906, 0
      %v1198 = vsel %vm1181, %v909, 0
      %v1201 = vsel %vm1181, %v912, 0
      %v1204 = vsel %vm1181, %v915, 0
      %v1207 = vsel %vm1181, %v918, 0
      %v1210 = vsel %vm1181, %v921, 0
      %v1213 = vsel %vm1181, %v924, 0
      %v1216 = vsel %vm1181, %v927, 0
      %v1219 = vsel %vm1181, %v930, 0
      %v1222 = vsel %vm1181, %v933, 0
      %v1225 = vsel %vm1181, %v936, 0
      %v1228 = vsel %vm1181, %v939, 0
      %v1231 = vsel %vm1181, %v942, 0
      %v1234 = vsel %vm1181, %v945, 0
      %v1237 = vsel %vm1181, %v948, 0
      %v1240 = vsel %vm1181, %v951, 0
      %v1243 = vsel %vm1181, %v954, 0
      %v1246 = vsel %vm1181, %v957, 0
      %v1249 = vsel %vm1181, %v960, 0
      %v1252 = vsel %vm1181, %v963, 0
      %v1255 = vsel %vm1181, %v966, 0
      %v1258 = vsel %vm1181, %v969, 0
      %v1261 = vsel %vm1181, %v972, 0
      %v1264 = vsel %vm1181, %v975, 0
      %v1267 = vsel %vm1181, %v978, 0
      %v1270 = vsel %vm1181, %v981, 0
      %v1273 = vsel %vm1181, %v984, 0
      %v1276 = vsel %vm1181, %v987, 0
      %vm1278 = vcmask 1042432
      %vm1279 = vcmask 1043456
      %v1280 = vsel %vm1278, 4294967295, 65535
      %v1281 = vsel %vm1279, %v1280, 0
      %v1283 = vand.u32 %v1159, %v1281
      %1285 = vmatprep.subr.bf16.mxu0 0
      %1286 = vmatpush1.bf16.msra.mxu0 %v1138
      %1287 = vmatprep.subr.bf16.mxu0 0
      %1288 = vmatpush1.bf16.msra.mxu0 %v1139
      %1289 = vmatprep.subr.bf16.mxu0 0
      %1290 = vmatpush1.bf16.msra.mxu0 %v1140
      %1291 = vmatprep.subr.bf16.mxu0 0
      %1292 = vmatpush1.bf16.msra.mxu0 %v1141
      %1293 = vmatprep.subr.bf16.mxu0 0
      %1294 = vmatpush1.bf16.msra.mxu0 %v1142
      %1295 = vmatprep.subr.bf16.mxu0 0
      %1296 = vmatpush1.bf16.msra.mxu0 %v1143
      %1297 = vmatprep.subr.bf16.mxu0 0
      %1298 = vmatpush1.bf16.msra.mxu0 %v1144
      %1299 = vmatprep.subr.bf16.mxu0 0
      %1300 = vmatpush1.bf16.msra.mxu0 %v1145
      %1301 = vmatprep.subr.bf16.mxu0 0
      %1302 = vmatpush1.bf16.msra.mxu0 %v1146
      %1303 = vmatprep.subr.bf16.mxu0 0
      %1304 = vmatpush1.bf16.msra.mxu0 %v1147
      %1305 = vmatprep.subr.bf16.mxu0 0
      %1306 = vmatpush1.bf16.msra.mxu0 %v1148
      %1307 = vmatprep.subr.bf16.mxu0 0
      %1308 = vmatpush1.bf16.msra.mxu0 %v1149
      %1309 = vmatprep.subr.bf16.mxu0 0
      %1310 = vmatpush1.bf16.msra.mxu0 %v1150
      %1311 = vmatprep.subr.bf16.mxu0 0
      %1312 = vmatpush1.bf16.msra.mxu0 %v1151
      %1313 = vmatprep.subr.bf16.mxu0 0
      %1314 = vmatpush1.bf16.msra.mxu0 %v1152
      %1315 = vmatprep.subr.bf16.mxu0 0
      %1316 = vmatpush1.bf16.msra.mxu0 %v1153
      %1317 = vmatprep.mubr.bf16.mxu0 %v893
      %1318 = vmatmul.mubr.bf16.gmra.mrb[0].mxu0 %v892
      %v1319 = vpop.f32.mrb[0].mxu0
      %v1320 = vadd.f32 0.0, %v1319
      %v1321 = vpop.f32.mrb[0].mxu0
      %v1322 = vpop.f32.mrb[0].mxu0
      %v1323 = vadd.f32 0.0, %v1322
      %v1324 = vpop.f32.mrb[0].mxu0
      %1325 = vmatprep.mubr.bf16.mxu0 %v896
      %1326 = vmatmul.mubr.bf16.gmra.mrb[0].mxu0 %v895
      %v1327 = vpop.f32.mrb[0].mxu0
      %v1328 = vadd.f32 0.0, %v1327
      %v1329 = vpop.f32.mrb[0].mxu0
      %v1330 = vpop.f32.mrb[0].mxu0
      %v1331 = vadd.f32 0.0, %v1330
      %v1332 = vpop.f32.mrb[0].mxu0
      %1333 = vmatprep.mubr.bf16.mxu0 %v899
      %1334 = vmatmul.mubr.bf16.gmra.mrb[0].mxu0 %v898
      %v1335 = vpop.f32.mrb[0].mxu0
      %v1336 = vadd.f32 0.0, %v1335
      %v1337 = vpop.f32.mrb[0].mxu0
      %v1338 = vpop.f32.mrb[0].mxu0
      %v1339 = vadd.f32 0.0, %v1338
      %v1340 = vpop.f32.mrb[0].mxu0
      %1341 = vmatprep.mubr.bf16.mxu0 %v902
      %1342 = vmatmul.mubr.bf16.gmra.mrb[0].mxu0 %v901
      %v1343 = vpop.f32.mrb[0].mxu0
      %v1344 = vadd.f32 0.0, %v1343
      %v1345 = vpop.f32.mrb[0].mxu0
      %v1346 = vpop.f32.mrb[0].mxu0
      %v1347 = vadd.f32 0.0, %v1346
      %v1348 = vpop.f32.mrb[0].mxu0
      %1349 = vmatprep.mubr.bf16.mxu0 %v905
      %1350 = vmatmul.mubr.bf16.gmra.mrb[0].mxu0 %v904
      %v1351 = vpop.f32.mrb[0].mxu0
      %v1352 = vadd.f32 0.0, %v1351
      %v1353 = vpop.f32.mrb[0].mxu0
      %v1354 = vpop.f32.mrb[0].mxu0
      %v1355 = vadd.f32 0.0, %v1354
      %v1356 = vpop.f32.mrb[0].mxu0
      %1357 = vmatprep.mubr.bf16.mxu0 %v908
      %1358 = vmatmul.mubr.bf16.gmra.mrb[0].mxu0 %v907
      %v1359 = vpop.f32.mrb[0].mxu0
      %v1360 = vadd.f32 0.0, %v1359
      %v1361 = vpop.f32.mrb[0].mxu0
      %v1362 = vpop.f32.mrb[0].mxu0
      %v1363 = vadd.f32 0.0, %v1362
      %v1364 = vpop.f32.mrb[0].mxu0
      %1365 = vmatprep.mubr.bf16.mxu0 %v911
      %1366 = vmatmul.mubr.bf16.gmra.mrb[0].mxu0 %v910
      %v1367 = vpop.f32.mrb[0].mxu0
      %v1368 = vadd.f32 0.0, %v1367
      %v1369 = vpop.f32.mrb[0].mxu0
      %v1370 = vpop.f32.mrb[0].mxu0
      %v1371 = vadd.f32 0.0, %v1370
      %v1372 = vpop.f32.mrb[0].mxu0
      %1373 = vmatprep.mubr.bf16.mxu0 %v914
      %1374 = vmatmul.mubr.bf16.gmra.mrb[0].mxu0 %v913
      %v1375 = vpop.f32.mrb[0].mxu0
      %v1376 = vadd.f32 0.0, %v1375
      %v1377 = vpop.f32.mrb[0].mxu0
      %v1378 = vpop.f32.mrb[0].mxu0
      %v1379 = vadd.f32 0.0, %v1378
      %v1380 = vpop.f32.mrb[0].mxu0
      %1381 = vmatprep.mubr.bf16.mxu0 %v917
      %1382 = vmatmul.mubr.bf16.gmra.mrb[0].mxu0 %v916
      %v1383 = vpop.f32.mrb[0].mxu0
      %v1384 = vadd.f32 0.0, %v1383
      %v1385 = vpop.f32.mrb[0].mxu0
      %v1386 = vpop.f32.mrb[0].mxu0
      %v1387 = vadd.f32 0.0, %v1386
      %v1388 = vpop.f32.mrb[0].mxu0
      %1389 = vmatprep.mubr.bf16.mxu0 %v920
      %1390 = vmatmul.mubr.bf16.gmra.mrb[0].mxu0 %v919
      %v1391 = vpop.f32.mrb[0].mxu0
      %v1392 = vadd.f32 0.0, %v1391
      %v1393 = vpop.f32.mrb[0].mxu0
      %v1394 = vpop.f32.mrb[0].mxu0
      %v1395 = vadd.f32 0.0, %v1394
      %v1396 = vpop.f32.mrb[0].mxu0
      %1397 = vmatprep.mubr.bf16.mxu0 %v923
      %1398 = vmatmul.mubr.bf16.gmra.mrb[0].mxu0 %v922
      %v1399 = vpop.f32.mrb[0].mxu0
      %v1400 = vadd.f32 0.0, %v1399
      %v1401 = vpop.f32.mrb[0].mxu0
      %v1402 = vpop.f32.mrb[0].mxu0
      %v1403 = vadd.f32 0.0, %v1402
      %v1404 = vpop.f32.mrb[0].mxu0
      %1405 = vmatprep.mubr.bf16.mxu0 %v926
      %1406 = vmatmul.mubr.bf16.gmra.mrb[0].mxu0 %v925
      %v1407 = vpop.f32.mrb[0].mxu0
      %v1408 = vadd.f32 0.0, %v1407
      %v1409 = vpop.f32.mrb[0].mxu0
      %v1410 = vpop.f32.mrb[0].mxu0
      %v1411 = vadd.f32 0.0, %v1410
      %v1412 = vpop.f32.mrb[0].mxu0
      %1413 = vmatprep.mubr.bf16.mxu0 %v929
      %1414 = vmatmul.mubr.bf16.gmra.mrb[0].mxu0 %v928
      %v1415 = vpop.f32.mrb[0].mxu0
      %v1416 = vadd.f32 0.0, %v1415
      %v1417 = vpop.f32.mrb[0].mxu0
      %v1418 = vpop.f32.mrb[0].mxu0
      %v1419 = vadd.f32 0.0, %v1418
      %v1420 = vpop.f32.mrb[0].mxu0
      %1421 = vmatprep.mubr.bf16.mxu0 %v932
      %1422 = vmatmul.mubr.bf16.gmra.mrb[0].mxu0 %v931
      %v1423 = vpop.f32.mrb[0].mxu0
      %v1424 = vadd.f32 0.0, %v1423
      %v1425 = vpop.f32.mrb[0].mxu0
      %v1426 = vpop.f32.mrb[0].mxu0
      %v1427 = vadd.f32 0.0, %v1426
      %v1428 = vpop.f32.mrb[0].mxu0
      %1429 = vmatprep.mubr.bf16.mxu0 %v935
      %1430 = vmatmul.mubr.bf16.gmra.mrb[0].mxu0 %v934
      %v1431 = vpop.f32.mrb[0].mxu0
      %v1432 = vadd.f32 0.0, %v1431
      %v1433 = vpop.f32.mrb[0].mxu0
      %v1434 = vpop.f32.mrb[0].mxu0
      %v1435 = vadd.f32 0.0, %v1434
      %v1436 = vpop.f32.mrb[0].mxu0
      %1437 = vmatprep.mubr.bf16.mxu0 %v938
      %1438 = vmatmul.mubr.bf16.gmra.mrb[0].mxu0 %v937
      %v1439 = vpop.f32.mrb[0].mxu0
      %v1440 = vadd.f32 0.0, %v1439
      %v1441 = vpop.f32.mrb[0].mxu0
      %v1442 = vpop.f32.mrb[0].mxu0
      %v1443 = vadd.f32 0.0, %v1442
      %v1444 = vpop.f32.mrb[0].mxu0
      %1445 = vmatprep.mubr.bf16.mxu0 %v941
      %1446 = vmatmul.mubr.bf16.gmra.mrb[0].mxu0 %v940
      %v1447 = vpop.f32.mrb[0].mxu0
      %v1448 = vadd.f32 0.0, %v1447
      %v1449 = vpop.f32.mrb[0].mxu0
      %v1450 = vpop.f32.mrb[0].mxu0
      %v1451 = vadd.f32 0.0, %v1450
      %v1452 = vpop.f32.mrb[0].mxu0
      %1453 = vmatprep.mubr.bf16.mxu0 %v944
      %1454 = vmatmul.mubr.bf16.gmra.mrb[0].mxu0 %v943
      %v1455 = vpop.f32.mrb[0].mxu0
      %v1456 = vadd.f32 0.0, %v1455
      %v1457 = vpop.f32.mrb[0].mxu0
      %v1458 = vpop.f32.mrb[0].mxu0
      %v1459 = vadd.f32 0.0, %v1458
      %v1460 = vpop.f32.mrb[0].mxu0
      %1461 = vmatprep.mubr.bf16.mxu0 %v947
      %1462 = vmatmul.mubr.bf16.gmra.mrb[0].mxu0 %v946
      %v1463 = vpop.f32.mrb[0].mxu0
      %v1464 = vadd.f32 0.0, %v1463
      %v1465 = vpop.f32.mrb[0].mxu0
      %v1466 = vpop.f32.mrb[0].mxu0
      %v1467 = vadd.f32 0.0, %v1466
      %v1468 = vpop.f32.mrb[0].mxu0
      %1469 = vmatprep.mubr.bf16.mxu0 %v950
      %1470 = vmatmul.mubr.bf16.gmra.mrb[0].mxu0 %v949
      %v1471 = vpop.f32.mrb[0].mxu0
      %v1472 = vadd.f32 0.0, %v1471
      %v1473 = vpop.f32.mrb[0].mxu0
      %v1474 = vpop.f32.mrb[0].mxu0
      %v1475 = vadd.f32 0.0, %v1474
      %v1476 = vpop.f32.mrb[0].mxu0
      %1477 = vmatprep.mubr.bf16.mxu0 %v953
      %1478 = vmatmul.mubr.bf16.gmra.mrb[0].mxu0 %v952
      %v1479 = vpop.f32.mrb[0].mxu0
      %v1480 = vadd.f32 0.0, %v1479
      %v1481 = vpop.f32.mrb[0].mxu0
      %v1482 = vpop.f32.mrb[0].mxu0
      %v1483 = vadd.f32 0.0, %v1482
      %v1484 = vpop.f32.mrb[0].mxu0
      %1485 = vmatprep.mubr.bf16.mxu0 %v956
      %1486 = vmatmul.mubr.bf16.gmra.mrb[0].mxu0 %v955
      %v1487 = vpop.f32.mrb[0].mxu0
      %v1488 = vadd.f32 0.0, %v1487
      %v1489 = vpop.f32.mrb[0].mxu0
      %v1490 = vpop.f32.mrb[0].mxu0
      %v1491 = vadd.f32 0.0, %v1490
      %v1492 = vpop.f32.mrb[0].mxu0
      %1493 = vmatprep.mubr.bf16.mxu0 %v959
      %1494 = vmatmul.mubr.bf16.gmra.mrb[0].mxu0 %v958
      %v1495 = vpop.f32.mrb[0].mxu0
      %v1496 = vadd.f32 0.0, %v1495
      %v1497 = vpop.f32.mrb[0].mxu0
      %v1498 = vpop.f32.mrb[0].mxu0
      %v1499 = vadd.f32 0.0, %v1498
      %v1500 = vpop.f32.mrb[0].mxu0
      %1501 = vmatprep.mubr.bf16.mxu0 %v962
      %1502 = vmatmul.mubr.bf16.gmra.mrb[0].mxu0 %v961
      %v1503 = vpop.f32.mrb[0].mxu0
      %v1504 = vadd.f32 0.0, %v1503
      %v1505 = vpop.f32.mrb[0].mxu0
      %v1506 = vpop.f32.mrb[0].mxu0
      %v1507 = vadd.f32 0.0, %v1506
      %v1508 = vpop.f32.mrb[0].mxu0
      %1509 = vmatprep.mubr.bf16.mxu0 %v965
      %1510 = vmatmul.mubr.bf16.gmra.mrb[0].mxu0 %v964
      %v1511 = vpop.f32.mrb[0].mxu0
      %v1512 = vadd.f32 0.0, %v1511
      %v1513 = vpop.f32.mrb[0].mxu0
      %v1514 = vpop.f32.mrb[0].mxu0
      %v1515 = vadd.f32 0.0, %v1514
      %v1516 = vpop.f32.mrb[0].mxu0
      %1517 = vmatprep.mubr.bf16.mxu0 %v968
      %1518 = vmatmul.mubr.bf16.gmra.mrb[0].mxu0 %v967
      %v1519 = vpop.f32.mrb[0].mxu0
      %v1520 = vadd.f32 0.0, %v1519
      %v1521 = vpop.f32.mrb[0].mxu0
      %v1522 = vpop.f32.mrb[0].mxu0
      %v1523 = vadd.f32 0.0, %v1522
      %v1524 = vpop.f32.mrb[0].mxu0
      %1525 = vmatprep.mubr.bf16.mxu0 %v971
      %1526 = vmatmul.mubr.bf16.gmra.mrb[0].mxu0 %v970
      %v1527 = vpop.f32.mrb[0].mxu0
      %v1528 = vadd.f32 0.0, %v1527
      %v1529 = vpop.f32.mrb[0].mxu0
      %v1530 = vpop.f32.mrb[0].mxu0
      %v1531 = vadd.f32 0.0, %v1530
      %v1532 = vpop.f32.mrb[0].mxu0
      %1533 = vmatprep.mubr.bf16.mxu0 %v974
      %1534 = vmatmul.mubr.bf16.gmra.mrb[0].mxu0 %v973
      %v1535 = vpop.f32.mrb[0].mxu0
      %v1536 = vadd.f32 0.0, %v1535
      %v1537 = vpop.f32.mrb[0].mxu0
      %v1538 = vpop.f32.mrb[0].mxu0
      %v1539 = vadd.f32 0.0, %v1538
      %v1540 = vpop.f32.mrb[0].mxu0
      %1541 = vmatprep.mubr.bf16.mxu0 %v977
      %1542 = vmatmul.mubr.bf16.gmra.mrb[0].mxu0 %v976
      %v1543 = vpop.f32.mrb[0].mxu0
      %v1544 = vadd.f32 0.0, %v1543
      %v1545 = vpop.f32.mrb[0].mxu0
      %v1546 = vpop.f32.mrb[0].mxu0
      %v1547 = vadd.f32 0.0, %v1546
      %v1548 = vpop.f32.mrb[0].mxu0
      %1549 = vmatprep.mubr.bf16.mxu0 %v980
      %1550 = vmatmul.mubr.bf16.gmra.mrb[0].mxu0 %v979
      %v1551 = vpop.f32.mrb[0].mxu0
      %v1552 = vadd.f32 0.0, %v1551
      %v1553 = vpop.f32.mrb[0].mxu0
      %v1554 = vpop.f32.mrb[0].mxu0
      %v1555 = vadd.f32 0.0, %v1554
      %v1556 = vpop.f32.mrb[0].mxu0
      %1557 = vmatprep.mubr.bf16.mxu0 %v983
      %1558 = vmatmul.mubr.bf16.gmra.mrb[0].mxu0 %v982
      %v1559 = vpop.f32.mrb[0].mxu0
      %v1560 = vadd.f32 0.0, %v1559
      %v1561 = vpop.f32.mrb[0].mxu0
      %v1562 = vpop.f32.mrb[0].mxu0
      %v1563 = vadd.f32 0.0, %v1562
      %v1564 = vpop.f32.mrb[0].mxu0
      %1565 = vmatprep.mubr.bf16.mxu0 %v986
      %1566 = vmatmul.mubr.bf16.gmra.mrb[0].mxu0 %v985
      %v1567 = vpop.f32.mrb[0].mxu0
      %v1568 = vadd.f32 0.0, %v1567
      %v1569 = vpop.f32.mrb[0].mxu0
      %v1570 = vpop.f32.mrb[0].mxu0
      %v1571 = vadd.f32 0.0, %v1570
      %v1572 = vpop.f32.mrb[0].mxu0
      %1573 = vdwg.mxu0
      %1574 = vmatprep.subr.bf16.mxu0 0
      %1575 = vmatpush1.bf16.msra.mxu0 %v1154
      %1576 = vmatprep.subr.bf16.mxu0 0
      %1577 = vmatpush1.bf16.msra.mxu0 %v1155
      %1578 = vmatprep.subr.bf16.mxu0 0
      %1579 = vmatpush1.bf16.msra.mxu0 %v1156
      %1580 = vmatprep.subr.bf16.mxu0 0
      %1581 = vmatpush1.bf16.msra.mxu0 %v1157
      %1582 = vmatprep.subr.bf16.mxu0 0
      %1583 = vmatpush1.bf16.msra.mxu0 %v1158
      %1584 = vmatprep.subr.bf16.mxu0 0
      %1585 = vmatpush1.bf16.msra.mxu0 %v1283
      %1586 = vmatprep.subr.bf16.mxu0 0
      %1587 = vmatpush1.bf16.msra.mxu0 0
      %1588 = vmatprep.subr.bf16.mxu0 0
      %1589 = vmatpush1.bf16.msra.mxu0 0
      %1590 = vmatprep.subr.bf16.mxu0 0
      %1591 = vmatpush1.bf16.msra.mxu0 0
      %1592 = vmatprep.subr.bf16.mxu0 0
      %1593 = vmatpush1.bf16.msra.mxu0 0
      %1594 = vmatprep.subr.bf16.mxu0 0
      %1595 = vmatpush1.bf16.msra.mxu0 0
      %1596 = vmatprep.subr.bf16.mxu0 0
      %1597 = vmatpush1.bf16.msra.mxu0 0
      %1598 = vmatprep.subr.bf16.mxu0 0
      %1599 = vmatpush1.bf16.msra.mxu0 0
      %1600 = vmatprep.subr.bf16.mxu0 0
      %1601 = vmatpush1.bf16.msra.mxu0 0
      %1602 = vmatprep.subr.bf16.mxu0 0
      %1603 = vmatpush1.bf16.msra.mxu0 0
      %1604 = vmatprep.subr.bf16.mxu0 0
      %1605 = vmatpush1.bf16.msra.mxu0 0
      %1606 = vmatprep.mubr.bf16.mxu0 0
      %1607 = vmatmul.mubr.bf16.gmra.mrb[0].mxu0 %v1183
      %v1608 = vpop.f32.mrb[0].mxu0
      %v1609 = vadd.f32 %v1320, %v1608
      %v1610 = vpop.f32.mrb[0].mxu0
      %v1611 = vpop.f32.mrb[0].mxu0
      %v1612 = vadd.f32 %v1323, %v1611
      %v1613 = vpop.f32.mrb[0].mxu0
      %1614 = vmatprep.mubr.bf16.mxu0 0
      %1615 = vmatmul.mubr.bf16.gmra.mrb[0].mxu0 %v1186
      %v1616 = vpop.f32.mrb[0].mxu0
      %v1617 = vadd.f32 %v1328, %v1616
      %v1618 = vpop.f32.mrb[0].mxu0
      %v1619 = vpop.f32.mrb[0].mxu0
      %v1620 = vadd.f32 %v1331, %v1619
      %v1621 = vpop.f32.mrb[0].mxu0
      %1622 = vmatprep.mubr.bf16.mxu0 0
      %1623 = vmatmul.mubr.bf16.gmra.mrb[0].mxu0 %v1189
      %v1624 = vpop.f32.mrb[0].mxu0
      %v1625 = vadd.f32 %v1336, %v1624
      %v1626 = vpop.f32.mrb[0].mxu0
      %v1627 = vpop.f32.mrb[0].mxu0
      %v1628 = vadd.f32 %v1339, %v1627
      %v1629 = vpop.f32.mrb[0].mxu0
      %1630 = vmatprep.mubr.bf16.mxu0 0
      %1631 = vmatmul.mubr.bf16.gmra.mrb[0].mxu0 %v1192
      %v1632 = vpop.f32.mrb[0].mxu0
      %v1633 = vadd.f32 %v1344, %v1632
      %v1634 = vpop.f32.mrb[0].mxu0
      %v1635 = vpop.f32.mrb[0].mxu0
      %v1636 = vadd.f32 %v1347, %v1635
      %v1637 = vpop.f32.mrb[0].mxu0
      %1638 = vmatprep.mubr.bf16.mxu0 0
      %1639 = vmatmul.mubr.bf16.gmra.mrb[0].mxu0 %v1195
      %v1640 = vpop.f32.mrb[0].mxu0
      %v1641 = vadd.f32 %v1352, %v1640
      %v1642 = vpop.f32.mrb[0].mxu0
      %v1643 = vpop.f32.mrb[0].mxu0
      %v1644 = vadd.f32 %v1355, %v1643
      %v1645 = vpop.f32.mrb[0].mxu0
      %1646 = vmatprep.mubr.bf16.mxu0 0
      %1647 = vmatmul.mubr.bf16.gmra.mrb[0].mxu0 %v1198
      %v1648 = vpop.f32.mrb[0].mxu0
      %v1649 = vadd.f32 %v1360, %v1648
      %v1650 = vpop.f32.mrb[0].mxu0
      %v1651 = vpop.f32.mrb[0].mxu0
      %v1652 = vadd.f32 %v1363, %v1651
      %v1653 = vpop.f32.mrb[0].mxu0
      %1654 = vmatprep.mubr.bf16.mxu0 0
      %1655 = vmatmul.mubr.bf16.gmra.mrb[0].mxu0 %v1201
      %v1656 = vpop.f32.mrb[0].mxu0
      %v1657 = vadd.f32 %v1368, %v1656
      %v1658 = vpop.f32.mrb[0].mxu0
      %v1659 = vpop.f32.mrb[0].mxu0
      %v1660 = vadd.f32 %v1371, %v1659
      %v1661 = vpop.f32.mrb[0].mxu0
      %1662 = vmatprep.mubr.bf16.mxu0 0
      %1663 = vmatmul.mubr.bf16.gmra.mrb[0].mxu0 %v1204
      %v1664 = vpop.f32.mrb[0].mxu0
      %v1665 = vadd.f32 %v1376, %v1664
      %v1666 = vpop.f32.mrb[0].mxu0
      %v1667 = vpop.f32.mrb[0].mxu0
      %v1668 = vadd.f32 %v1379, %v1667
      %v1669 = vpop.f32.mrb[0].mxu0
      %1670 = vmatprep.mubr.bf16.mxu0 0
      %1671 = vmatmul.mubr.bf16.gmra.mrb[0].mxu0 %v1207
      %v1672 = vpop.f32.mrb[0].mxu0
      %v1673 = vadd.f32 %v1384, %v1672
      %v1674 = vpop.f32.mrb[0].mxu0
      %v1675 = vpop.f32.mrb[0].mxu0
      %v1676 = vadd.f32 %v1387, %v1675
      %v1677 = vpop.f32.mrb[0].mxu0
      %1678 = vmatprep.mubr.bf16.mxu0 0
      %1679 = vmatmul.mubr.bf16.gmra.mrb[0].mxu0 %v1210
      %v1680 = vpop.f32.mrb[0].mxu0
      %v1681 = vadd.f32 %v1392, %v1680
      %v1682 = vpop.f32.mrb[0].mxu0
      %v1683 = vpop.f32.mrb[0].mxu0
      %v1684 = vadd.f32 %v1395, %v1683
      %v1685 = vpop.f32.mrb[0].mxu0
      %1686 = vmatprep.mubr.bf16.mxu0 0
      %1687 = vmatmul.mubr.bf16.gmra.mrb[0].mxu0 %v1213
      %v1688 = vpop.f32.mrb[0].mxu0
      %v1689 = vadd.f32 %v1400, %v1688
      %v1690 = vpop.f32.mrb[0].mxu0
      %v1691 = vpop.f32.mrb[0].mxu0
      %v1692 = vadd.f32 %v1403, %v1691
      %v1693 = vpop.f32.mrb[0].mxu0
      %1694 = vmatprep.mubr.bf16.mxu0 0
      %1695 = vmatmul.mubr.bf16.gmra.mrb[0].mxu0 %v1216
      %v1696 = vpop.f32.mrb[0].mxu0
      %v1697 = vadd.f32 %v1408, %v1696
      %v1698 = vpop.f32.mrb[0].mxu0
      %v1699 = vpop.f32.mrb[0].mxu0
      %v1700 = vadd.f32 %v1411, %v1699
      %v1701 = vpop.f32.mrb[0].mxu0
      %1702 = vmatprep.mubr.bf16.mxu0 0
      %1703 = vmatmul.mubr.bf16.gmra.mrb[0].mxu0 %v1219
      %v1704 = vpop.f32.mrb[0].mxu0
      %v1705 = vadd.f32 %v1416, %v1704
      %v1706 = vpop.f32.mrb[0].mxu0
      %v1707 = vpop.f32.mrb[0].mxu0
      %v1708 = vadd.f32 %v1419, %v1707
      %v1709 = vpop.f32.mrb[0].mxu0
      %1710 = vmatprep.mubr.bf16.mxu0 0
      %1711 = vmatmul.mubr.bf16.gmra.mrb[0].mxu0 %v1222
      %v1712 = vpop.f32.mrb[0].mxu0
      %v1713 = vadd.f32 %v1424, %v1712
      %v1714 = vpop.f32.mrb[0].mxu0
      %v1715 = vpop.f32.mrb[0].mxu0
      %v1716 = vadd.f32 %v1427, %v1715
      %v1717 = vpop.f32.mrb[0].mxu0
      %1718 = vmatprep.mubr.bf16.mxu0 0
      %1719 = vmatmul.mubr.bf16.gmra.mrb[0].mxu0 %v1225
      %v1720 = vpop.f32.mrb[0].mxu0
      %v1721 = vadd.f32 %v1432, %v1720
      %v1722 = vpop.f32.mrb[0].mxu0
      %v1723 = vpop.f32.mrb[0].mxu0
      %v1724 = vadd.f32 %v1435, %v1723
      %v1725 = vpop.f32.mrb[0].mxu0
      %1726 = vmatprep.mubr.bf16.mxu0 0
      %1727 = vmatmul.mubr.bf16.gmra.mrb[0].mxu0 %v1228
      %v1728 = vpop.f32.mrb[0].mxu0
      %v1729 = vadd.f32 %v1440, %v1728
      %v1730 = vpop.f32.mrb[0].mxu0
      %v1731 = vpop.f32.mrb[0].mxu0
      %v1732 = vadd.f32 %v1443, %v1731
      %v1733 = vpop.f32.mrb[0].mxu0
      %1734 = vmatprep.mubr.bf16.mxu0 0
      %1735 = vmatmul.mubr.bf16.gmra.mrb[0].mxu0 %v1231
      %v1736 = vpop.f32.mrb[0].mxu0
      %v1737 = vadd.f32 %v1448, %v1736
      %v1738 = vpop.f32.mrb[0].mxu0
      %v1739 = vpop.f32.mrb[0].mxu0
      %v1740 = vadd.f32 %v1451, %v1739
      %v1741 = vpop.f32.mrb[0].mxu0
      %1742 = vmatprep.mubr.bf16.mxu0 0
      %1743 = vmatmul.mubr.bf16.gmra.mrb[0].mxu0 %v1234
      %v1744 = vpop.f32.mrb[0].mxu0
      %v1745 = vadd.f32 %v1456, %v1744
      %v1746 = vpop.f32.mrb[0].mxu0
      %v1747 = vpop.f32.mrb[0].mxu0
      %v1748 = vadd.f32 %v1459, %v1747
      %v1749 = vpop.f32.mrb[0].mxu0
      %1750 = vmatprep.mubr.bf16.mxu0 0
      %1751 = vmatmul.mubr.bf16.gmra.mrb[0].mxu0 %v1237
      %v1752 = vpop.f32.mrb[0].mxu0
      %v1753 = vadd.f32 %v1464, %v1752
      %v1754 = vpop.f32.mrb[0].mxu0
      %v1755 = vpop.f32.mrb[0].mxu0
      %v1756 = vadd.f32 %v1467, %v1755
      %v1757 = vpop.f32.mrb[0].mxu0
      %1758 = vmatprep.mubr.bf16.mxu0 0
      %1759 = vmatmul.mubr.bf16.gmra.mrb[0].mxu0 %v1240
      %v1760 = vpop.f32.mrb[0].mxu0
      %v1761 = vadd.f32 %v1472, %v1760
      %v1762 = vpop.f32.mrb[0].mxu0
      %v1763 = vpop.f32.mrb[0].mxu0
      %v1764 = vadd.f32 %v1475, %v1763
      %v1765 = vpop.f32.mrb[0].mxu0
      %1766 = vmatprep.mubr.bf16.mxu0 0
      %1767 = vmatmul.mubr.bf16.gmra.mrb[0].mxu0 %v1243
      %v1768 = vpop.f32.mrb[0].mxu0
      %v1769 = vadd.f32 %v1480, %v1768
      %v1770 = vpop.f32.mrb[0].mxu0
      %v1771 = vpop.f32.mrb[0].mxu0
      %v1772 = vadd.f32 %v1483, %v1771
      %v1773 = vpop.f32.mrb[0].mxu0
      %1774 = vmatprep.mubr.bf16.mxu0 0
      %1775 = vmatmul.mubr.bf16.gmra.mrb[0].mxu0 %v1246
      %v1776 = vpop.f32.mrb[0].mxu0
      %v1777 = vadd.f32 %v1488, %v1776
      %v1778 = vpop.f32.mrb[0].mxu0
      %v1779 = vpop.f32.mrb[0].mxu0
      %v1780 = vadd.f32 %v1491, %v1779
      %v1781 = vpop.f32.mrb[0].mxu0
      %1782 = vmatprep.mubr.bf16.mxu0 0
      %1783 = vmatmul.mubr.bf16.gmra.mrb[0].mxu0 %v1249
      %v1784 = vpop.f32.mrb[0].mxu0
      %v1785 = vadd.f32 %v1496, %v1784
      %v1786 = vpop.f32.mrb[0].mxu0
      %v1787 = vpop.f32.mrb[0].mxu0
      %v1788 = vadd.f32 %v1499, %v1787
      %v1789 = vpop.f32.mrb[0].mxu0
      %1790 = vmatprep.mubr.bf16.mxu0 0
      %1791 = vmatmul.mubr.bf16.gmra.mrb[0].mxu0 %v1252
      %v1792 = vpop.f32.mrb[0].mxu0
      %v1793 = vadd.f32 %v1504, %v1792
      %v1794 = vpop.f32.mrb[0].mxu0
      %v1795 = vpop.f32.mrb[0].mxu0
      %v1796 = vadd.f32 %v1507, %v1795
      %v1797 = vpop.f32.mrb[0].mxu0
      %1798 = vmatprep.mubr.bf16.mxu0 0
      %1799 = vmatmul.mubr.bf16.gmra.mrb[0].mxu0 %v1255
      %v1800 = vpop.f32.mrb[0].mxu0
      %v1801 = vadd.f32 %v1512, %v1800
      %v1802 = vpop.f32.mrb[0].mxu0
      %v1803 = vpop.f32.mrb[0].mxu0
      %v1804 = vadd.f32 %v1515, %v1803
      %v1805 = vpop.f32.mrb[0].mxu0
      %1806 = vmatprep.mubr.bf16.mxu0 0
      %1807 = vmatmul.mubr.bf16.gmra.mrb[0].mxu0 %v1258
      %v1808 = vpop.f32.mrb[0].mxu0
      %v1809 = vadd.f32 %v1520, %v1808
      %v1810 = vpop.f32.mrb[0].mxu0
      %v1811 = vpop.f32.mrb[0].mxu0
      %v1812 = vadd.f32 %v1523, %v1811
      %v1813 = vpop.f32.mrb[0].mxu0
      %1814 = vmatprep.mubr.bf16.mxu0 0
      %1815 = vmatmul.mubr.bf16.gmra.mrb[0].mxu0 %v1261
      %v1816 = vpop.f32.mrb[0].mxu0
      %v1817 = vadd.f32 %v1528, %v1816
      %v1818 = vpop.f32.mrb[0].mxu0
      %v1819 = vpop.f32.mrb[0].mxu0
      %v1820 = vadd.f32 %v1531, %v1819
      %v1821 = vpop.f32.mrb[0].mxu0
      %1822 = vmatprep.mubr.bf16.mxu0 0
      %1823 = vmatmul.mubr.bf16.gmra.mrb[0].mxu0 %v1264
      %v1824 = vpop.f32.mrb[0].mxu0
      %v1825 = vadd.f32 %v1536, %v1824
      %v1826 = vpop.f32.mrb[0].mxu0
      %v1827 = vpop.f32.mrb[0].mxu0
      %v1828 = vadd.f32 %v1539, %v1827
      %v1829 = vpop.f32.mrb[0].mxu0
      %1830 = vmatprep.mubr.bf16.mxu0 0
      %1831 = vmatmul.mubr.bf16.gmra.mrb[0].mxu0 %v1267
      %v1832 = vpop.f32.mrb[0].mxu0
      %v1833 = vadd.f32 %v1544, %v1832
      %v1834 = vpop.f32.mrb[0].mxu0
      %v1835 = vpop.f32.mrb[0].mxu0
      %v1836 = vadd.f32 %v1547, %v1835
      %v1837 = vpop.f32.mrb[0].mxu0
      %1838 = vmatprep.mubr.bf16.mxu0 0
      %1839 = vmatmul.mubr.bf16.gmra.mrb[0].mxu0 %v1270
      %v1840 = vpop.f32.mrb[0].mxu0
      %v1841 = vadd.f32 %v1552, %v1840
      %v1842 = vpop.f32.mrb[0].mxu0
      %v1843 = vpop.f32.mrb[0].mxu0
      %v1844 = vadd.f32 %v1555, %v1843
      %v1845 = vpop.f32.mrb[0].mxu0
      %1846 = vmatprep.mubr.bf16.mxu0 0
      %1847 = vmatmul.mubr.bf16.gmra.mrb[0].mxu0 %v1273
      %v1848 = vpop.f32.mrb[0].mxu0
      %v1849 = vadd.f32 %v1560, %v1848
      %v1850 = vpop.f32.mrb[0].mxu0
      %v1851 = vpop.f32.mrb[0].mxu0
      %v1852 = vadd.f32 %v1563, %v1851
      %v1853 = vpop.f32.mrb[0].mxu0
      %1854 = vmatprep.mubr.bf16.mxu0 0
      %1855 = vmatmul.mubr.bf16.gmra.mrb[0].mxu0 %v1276
      %v1856 = vpop.f32.mrb[0].mxu0
      %v1857 = vadd.f32 %v1568, %v1856
      %v1858 = vpop.f32.mrb[0].mxu0
      %v1859 = vpop.f32.mrb[0].mxu0
      %v1860 = vadd.f32 %v1571, %v1859
      %v1861 = vpop.f32.mrb[0].mxu0
      %1862 = vdwg.mxu0
      %v1863 = vadd.f32 %v337, %v1609
      %v1864 = vadd.f32 %v338, %v1612
      %v1865 = vadd.f32 %v339, %v1617
      %v1866 = vadd.f32 %v340, %v1620
      %v1867 = vadd.f32 %v341, %v1625
      %v1868 = vadd.f32 %v342, %v1628
      %v1869 = vadd.f32 %v343, %v1633
      %v1870 = vadd.f32 %v344, %v1636
      %v1871 = vadd.f32 %v345, %v1641
      %v1872 = vadd.f32 %v346, %v1644
      %v1873 = vadd.f32 %v347, %v1649
      %v1874 = vadd.f32 %v348, %v1652
      %v1875 = vadd.f32 %v349, %v1657
      %v1876 = vadd.f32 %v350, %v1660
      %v1877 = vadd.f32 %v351, %v1665
      %v1878 = vadd.f32 %v352, %v1668
      %v1879 = vadd.f32 %v353, %v1673
      %v1880 = vadd.f32 %v354, %v1676
      %v1881 = vadd.f32 %v355, %v1681
      %v1882 = vadd.f32 %v356, %v1684
      %v1883 = vadd.f32 %v357, %v1689
      %v1884 = vadd.f32 %v358, %v1692
      %v1885 = vadd.f32 %v359, %v1697
      %v1886 = vadd.f32 %v360, %v1700
      %v1887 = vadd.f32 %v361, %v1705
      %v1888 = vadd.f32 %v362, %v1708
      %v1889 = vadd.f32 %v363, %v1713
      %v1890 = vadd.f32 %v364, %v1716
      %v1891 = vadd.f32 %v365, %v1721
      %v1892 = vadd.f32 %v366, %v1724
      %v1893 = vadd.f32 %v367, %v1729
      %v1894 = vadd.f32 %v368, %v1732
      %v1895 = vadd.f32 %v369, %v1737
      %v1896 = vadd.f32 %v370, %v1740
      %v1897 = vadd.f32 %v371, %v1745
      %v1898 = vadd.f32 %v372, %v1748
      %v1899 = vadd.f32 %v373, %v1753
      %v1900 = vadd.f32 %v374, %v1756
      %v1901 = vadd.f32 %v375, %v1761
      %v1902 = vadd.f32 %v376, %v1764
      %v1903 = vadd.f32 %v377, %v1769
      %v1904 = vadd.f32 %v378, %v1772
      %v1905 = vadd.f32 %v379, %v1777
      %v1906 = vadd.f32 %v380, %v1780
      %v1907 = vadd.f32 %v381, %v1785
      %v1908 = vadd.f32 %v382, %v1788
      %v1909 = vadd.f32 %v383, %v1793
      %v1910 = vadd.f32 %v384, %v1796
      %v1911 = vadd.f32 %v385, %v1801
      %v1912 = vadd.f32 %v386, %v1804
      %v1913 = vadd.f32 %v387, %v1809
      %v1914 = vadd.f32 %v388, %v1812
      %v1915 = vadd.f32 %v389, %v1817
      %v1916 = vadd.f32 %v390, %v1820
      %v1917 = vadd.f32 %v391, %v1825
      %v1918 = vadd.f32 %v392, %v1828
      %v1919 = vadd.f32 %v393, %v1833
      %v1920 = vadd.f32 %v394, %v1836
      %v1921 = vadd.f32 %v395, %v1841
      %v1922 = vadd.f32 %v396, %v1844
      %v1923 = vadd.f32 %v397, %v1849
      %v1924 = vadd.f32 %v398, %v1852
      %v1925 = vadd.f32 %v399, %v1857
      %v1926 = vadd.f32 %v400, %v1860
      %vm1927 = vcmask 523264
      %1928 = vst.msk [vmem:[#allocation2] sm:$0xff] %vm1927, %v1863
      %1929 = vst.msk [vmem:[#allocation2 + $0x8] sm:$0xff] %vm1927, %v1864
      %1930 = vst.msk [vmem:[#allocation2 + $0x10] sm:$0xff] %vm1927, %v1865
      %1931 = vst.msk [vmem:[#allocation2 + $0x18] sm:$0xff] %vm1927, %v1866
      %1932 = vst.msk [vmem:[#allocation2 + $0x20] sm:$0xff] %vm1927, %v1867
      %1933 = vst.msk [vmem:[#allocation2 + $0x28] sm:$0xff] %vm1927, %v1868
      %1934 = vst.msk [vmem:[#allocation2 + $0x30] sm:$0xff] %vm1927, %v1869
      %1935 = vst.msk [vmem:[#allocation2 + $0x38] sm:$0xff] %vm1927, %v1870
      %1936 = vst.msk [vmem:[#allocation2 + $0x40] sm:$0xff] %vm1927, %v1871
      %1937 = vst.msk [vmem:[#allocation2 + $0x48] sm:$0xff] %vm1927, %v1872
      %1938 = vst.msk [vmem:[#allocation2 + $0x50] sm:$0xff] %vm1927, %v1873
      %1939 = vst.msk [vmem:[#allocation2 + $0x58] sm:$0xff] %vm1927, %v1874
      %1940 = vst.msk [vmem:[#allocation2 + $0x60] sm:$0xff] %vm1927, %v1875
      %1941 = vst.msk [vmem:[#allocation2 + $0x68] sm:$0xff] %vm1927, %v1876
      %1942 = vst.msk [vmem:[#allocation2 + $0x70] sm:$0xff] %vm1927, %v1877
      %1943 = vst.msk [vmem:[#allocation2 + $0x78] sm:$0xff] %vm1927, %v1878
      %1944 = vst.msk [vmem:[#allocation2 + $0x80] sm:$0xff] %vm1927, %v1879
      %1945 = vst.msk [vmem:[#allocation2 + $0x88] sm:$0xff] %vm1927, %v1880
      %1946 = vst.msk [vmem:[#allocation2 + $0x90] sm:$0xff] %vm1927, %v1881
      %1947 = vst.msk [vmem:[#allocation2 + $0x98] sm:$0xff] %vm1927, %v1882
      %1948 = vst.msk [vmem:[#allocation2 + $0xa0] sm:$0xff] %vm1927, %v1883
      %1949 = vst.msk [vmem:[#allocation2 + $0xa8] sm:$0xff] %vm1927, %v1884
      %1950 = vst.msk [vmem:[#allocation2 + $0xb0] sm:$0xff] %vm1927, %v1885
      %1951 = vst.msk [vmem:[#allocation2 + $0xb8] sm:$0xff] %vm1927, %v1886
      %1952 = vst.msk [vmem:[#allocation2 + $0xc0] sm:$0xff] %vm1927, %v1887
      %1953 = vst.msk [vmem:[#allocation2 + $0xc8] sm:$0xff] %vm1927, %v1888
      %1954 = vst.msk [vmem:[#allocation2 + $0xd0] sm:$0xff] %vm1927, %v1889
      %1955 = vst.msk [vmem:[#allocation2 + $0xd8] sm:$0xff] %vm1927, %v1890
      %1956 = vst.msk [vmem:[#allocation2 + $0xe0] sm:$0xff] %vm1927, %v1891
      %1957 = vst.msk [vmem:[#allocation2 + $0xe8] sm:$0xff] %vm1927, %v1892
      %1958 = vst.msk [vmem:[#allocation2 + $0xf0] sm:$0xff] %vm1927, %v1893
      %1959 = vst.msk [vmem:[#allocation2 + $0xf8] sm:$0xff] %vm1927, %v1894
      %1960 = vst.msk [vmem:[#allocation2 + $0x100] sm:$0xff] %vm1927, %v1895
      %1961 = vst.msk [vmem:[#allocation2 + $0x108] sm:$0xff] %vm1927, %v1896
      %1962 = vst.msk [vmem:[#allocation2 + $0x110] sm:$0xff] %vm1927, %v1897
      %1963 = vst.msk [vmem:[#allocation2 + $0x118] sm:$0xff] %vm1927, %v1898
      %1964 = vst.msk [vmem:[#allocation2 + $0x120] sm:$0xff] %vm1927, %v1899
      %1965 = vst.msk [vmem:[#allocation2 + $0x128] sm:$0xff] %vm1927, %v1900
      %1966 = vst.msk [vmem:[#allocation2 + $0x130] sm:$0xff] %vm1927, %v1901
      %1967 = vst.msk [vmem:[#allocation2 + $0x138] sm:$0xff] %vm1927, %v1902
      %1968 = vst.msk [vmem:[#allocation2 + $0x140] sm:$0xff] %vm1927, %v1903
      %1969 = vst.msk [vmem:[#allocation2 + $0x148] sm:$0xff] %vm1927, %v1904
      %1970 = vst.msk [vmem:[#allocation2 + $0x150] sm:$0xff] %vm1927, %v1905
      %1971 = vst.msk [vmem:[#allocation2 + $0x158] sm:$0xff] %vm1927, %v1906
      %1972 = vst.msk [vmem:[#allocation2 + $0x160] sm:$0xff] %vm1927, %v1907
      %1973 = vst.msk [vmem:[#allocation2 + $0x168] sm:$0xff] %vm1927, %v1908
      %1974 = vst.msk [vmem:[#allocation2 + $0x170] sm:$0xff] %vm1927, %v1909
      %1975 = vst.msk [vmem:[#allocation2 + $0x178] sm:$0xff] %vm1927, %v1910
      %1976 = vst.msk [vmem:[#allocation2 + $0x180] sm:$0xff] %vm1927, %v1911
      %1977 = vst.msk [vmem:[#allocation2 + $0x188] sm:$0xff] %vm1927, %v1912
      %1978 = vst.msk [vmem:[#allocation2 + $0x190] sm:$0xff] %vm1927, %v1913
      %1979 = vst.msk [vmem:[#allocation2 + $0x198] sm:$0xff] %vm1927, %v1914
      %1980 = vst.msk [vmem:[#allocation2 + $0x1a0] sm:$0xff] %vm1927, %v1915
      %1981 = vst.msk [vmem:[#allocation2 + $0x1a8] sm:$0xff] %vm1927, %v1916
      %1982 = vst.msk [vmem:[#allocation2 + $0x1b0] sm:$0xff] %vm1927, %v1917
      %1983 = vst.msk [vmem:[#allocation2 + $0x1b8] sm:$0xff] %vm1927, %v1918
      %1984 = vst.msk [vmem:[#allocation2 + $0x1c0] sm:$0xff] %vm1927, %v1919
      %1985 = vst.msk [vmem:[#allocation2 + $0x1c8] sm:$0xff] %vm1927, %v1920
      %1986 = vst.msk [vmem:[#allocation2 + $0x1d0] sm:$0xff] %vm1927, %v1921
      %1987 = vst.msk [vmem:[#allocation2 + $0x1d8] sm:$0xff] %vm1927, %v1922
      %1988 = vst.msk [vmem:[#allocation2 + $0x1e0] sm:$0xff] %vm1927, %v1923
      %1989 = vst.msk [vmem:[#allocation2 + $0x1e8] sm:$0xff] %vm1927, %v1924
      %1990 = vst.msk [vmem:[#allocation2 + $0x1f0] sm:$0xff] %vm1927, %v1925
      %1991 = vst.msk [vmem:[#allocation2 + $0x1f8] sm:$0xff] %vm1927, %v1926
      // Predicated region
      $region37: #{_matmul_pallas.1} parent=31 // pred_check
        %p1992 = pneg %p268
      $region38: #{_matmul_pallas.1} parent=31 // pred_check_branch
        %1994 = sbr.rel (%p1992) target = $region40
      $region39: #{_matmul_pallas.1} parent=31 // pred_region
        %v1995 = vld [vmem:[#allocation2] sm:$0xff]
        %v1996 = vld [vmem:[#allocation2 + $0x8] sm:$0xff]
        %v1997 = vld [vmem:[#allocation2 + $0x10] sm:$0xff]
        %v1998 = vld [vmem:[#allocation2 + $0x18] sm:$0xff]
        %v1999 = vld [vmem:[#allocation2 + $0x20] sm:$0xff]
        %v2000 = vld [vmem:[#allocation2 + $0x28] sm:$0xff]
        %v2001 = vld [vmem:[#allocation2 + $0x30] sm:$0xff]
        %v2002 = vld [vmem:[#allocation2 + $0x38] sm:$0xff]
        %v2003 = vld [vmem:[#allocation2 + $0x40] sm:$0xff]
        %v2004 = vld [vmem:[#allocation2 + $0x48] sm:$0xff]
        %v2005 = vld [vmem:[#allocation2 + $0x50] sm:$0xff]
        %v2006 = vld [vmem:[#allocation2 + $0x58] sm:$0xff]
        %v2007 = vld [vmem:[#allocation2 + $0x60] sm:$0xff]
        %v2008 = vld [vmem:[#allocation2 + $0x68] sm:$0xff]
        %v2009 = vld [vmem:[#allocation2 + $0x70] sm:$0xff]
        %v2010 = vld [vmem:[#allocation2 + $0x78] sm:$0xff]
        %v2011 = vld [vmem:[#allocation2 + $0x80] sm:$0xff]
        %v2012 = vld [vmem:[#allocation2 + $0x88] sm:$0xff]
        %v2013 = vld [vmem:[#allocation2 + $0x90] sm:$0xff]
        %v2014 = vld [vmem:[#allocation2 + $0x98] sm:$0xff]
        %v2015 = vld [vmem:[#allocation2 + $0xa0] sm:$0xff]
        %v2016 = vld [vmem:[#allocation2 + $0xa8] sm:$0xff]
        %v2017 = vld [vmem:[#allocation2 + $0xb0] sm:$0xff]
        %v2018 = vld [vmem:[#allocation2 + $0xb8] sm:$0xff]
        %v2019 = vld [vmem:[#allocation2 + $0xc0] sm:$0xff]
        %v2020 = vld [vmem:[#allocation2 + $0xc8] sm:$0xff]
        %v2021 = vld [vmem:[#allocation2 + $0xd0] sm:$0xff]
        %v2022 = vld [vmem:[#allocation2 + $0xd8] sm:$0xff]
        %v2023 = vld [vmem:[#allocation2 + $0xe0] sm:$0xff]
        %v2024 = vld [vmem:[#allocation2 + $0xe8] sm:$0xff]
        %v2025 = vld [vmem:[#allocation2 + $0xf0] sm:$0xff]
        %v2026 = vld [vmem:[#allocation2 + $0xf8] sm:$0xff]
        %v2027 = vld [vmem:[#allocation2 + $0x100] sm:$0xff]
        %v2028 = vld [vmem:[#allocation2 + $0x108] sm:$0xff]
        %v2029 = vld [vmem:[#allocation2 + $0x110] sm:$0xff]
        %v2030 = vld [vmem:[#allocation2 + $0x118] sm:$0xff]
        %v2031 = vld [vmem:[#allocation2 + $0x120] sm:$0xff]
        %v2032 = vld [vmem:[#allocation2 + $0x128] sm:$0xff]
        %v2033 = vld [vmem:[#allocation2 + $0x130] sm:$0xff]
        %v2034 = vld [vmem:[#allocation2 + $0x138] sm:$0xff]
        %v2035 = vld [vmem:[#allocation2 + $0x140] sm:$0xff]
        %v2036 = vld [vmem:[#allocation2 + $0x148] sm:$0xff]
        %v2037 = vld [vmem:[#allocation2 + $0x150] sm:$0xff]
        %v2038 = vld [vmem:[#allocation2 + $0x158] sm:$0xff]
        %v2039 = vld [vmem:[#allocation2 + $0x160] sm:$0xff]
        %v2040 = vld [vmem:[#allocation2 + $0x168] sm:$0xff]
        %v2041 = vld [vmem:[#allocation2 + $0x170] sm:$0xff]
        %v2042 = vld [vmem:[#allocation2 + $0x178] sm:$0xff]
        %v2043 = vld [vmem:[#allocation2 + $0x180] sm:$0xff]
        %v2044 = vld [vmem:[#allocation2 + $0x188] sm:$0xff]
        %v2045 = vld [vmem:[#allocation2 + $0x190] sm:$0xff]
        %v2046 = vld [vmem:[#allocation2 + $0x198] sm:$0xff]
        %v2047 = vld [vmem:[#allocation2 + $0x1a0] sm:$0xff]
        %v2048 = vld [vmem:[#allocation2 + $0x1a8] sm:$0xff]
        %v2049 = vld [vmem:[#allocation2 + $0x1b0] sm:$0xff]
        %v2050 = vld [vmem:[#allocation2 + $0x1b8] sm:$0xff]
        %v2051 = vld [vmem:[#allocation2 + $0x1c0] sm:$0xff]
        %v2052 = vld [vmem:[#allocation2 + $0x1c8] sm:$0xff]
        %v2053 = vld [vmem:[#allocation2 + $0x1d0] sm:$0xff]
        %v2054 = vld [vmem:[#allocation2 + $0x1d8] sm:$0xff]
        %v2055 = vld [vmem:[#allocation2 + $0x1e0] sm:$0xff]
        %v2056 = vld [vmem:[#allocation2 + $0x1e8] sm:$0xff]
        %v2057 = vld [vmem:[#allocation2 + $0x1f0] sm:$0xff]
        %v2058 = vld [vmem:[#allocation2 + $0x1f8] sm:$0xff]
        %v2059 = vld [vmem:[%s257] sm:$0x1]
        %v2061 = vlaneseq
        %v2062 = vshrl.u32 %v2061, 7
        %v2063 = vsub.s32 0, %v2062
        %v2064 = vrot.slane %v2059, %v2063
        %v2066 = vadd.f32 %v1995, %v2064
        %v2067 = vadd.f32 %v1996, %v2064
        %v2068 = vadd.f32 %v1997, %v2064
        %v2069 = vadd.f32 %v1998, %v2064
        %v2070 = vadd.f32 %v1999, %v2064
        %v2071 = vadd.f32 %v2000, %v2064
        %v2072 = vadd.f32 %v2001, %v2064
        %v2073 = vadd.f32 %v2002, %v2064
        %v2074 = vadd.f32 %v2003, %v2064
        %v2075 = vadd.f32 %v2004, %v2064
        %v2076 = vadd.f32 %v2005, %v2064
        %v2077 = vadd.f32 %v2006, %v2064
        %v2078 = vadd.f32 %v2007, %v2064
        %v2079 = vadd.f32 %v2008, %v2064
        %v2080 = vadd.f32 %v2009, %v2064
        %v2081 = vadd.f32 %v2010, %v2064
        %v2082 = vadd.f32 %v2011, %v2064
        %v2083 = vadd.f32 %v2012, %v2064
        %v2084 = vadd.f32 %v2013, %v2064
        %v2085 = vadd.f32 %v2014, %v2064
        %v2086 = vadd.f32 %v2015, %v2064
        %v2087 = vadd.f32 %v2016, %v2064
        %v2088 = vadd.f32 %v2017, %v2064
        %v2089 = vadd.f32 %v2018, %v2064
        %v2090 = vadd.f32 %v2019, %v2064
        %v2091 = vadd.f32 %v2020, %v2064
        %v2092 = vadd.f32 %v2021, %v2064
        %v2093 = vadd.f32 %v2022, %v2064
        %v2094 = vadd.f32 %v2023, %v2064
        %v2095 = vadd.f32 %v2024, %v2064
        %v2096 = vadd.f32 %v2025, %v2064
        %v2097 = vadd.f32 %v2026, %v2064
        %v2098 = vadd.f32 %v2027, %v2064
        %v2099 = vadd.f32 %v2028, %v2064
        %v2100 = vadd.f32 %v2029, %v2064
        %v2101 = vadd.f32 %v2030, %v2064
        %v2102 = vadd.f32 %v2031, %v2064
        %v2103 = vadd.f32 %v2032, %v2064
        %v2104 = vadd.f32 %v2033, %v2064
        %v2105 = vadd.f32 %v2034, %v2064
        %v2106 = vadd.f32 %v2035, %v2064
        %v2107 = vadd.f32 %v2036, %v2064
        %v2108 = vadd.f32 %v2037, %v2064
        %v2109 = vadd.f32 %v2038, %v2064
        %v2110 = vadd.f32 %v2039, %v2064
        %v2111 = vadd.f32 %v2040, %v2064
        %v2112 = vadd.f32 %v2041, %v2064
        %v2113 = vadd.f32 %v2042, %v2064
        %v2114 = vadd.f32 %v2043, %v2064
        %v2115 = vadd.f32 %v2044, %v2064
        %v2116 = vadd.f32 %v2045, %v2064
        %v2117 = vadd.f32 %v2046, %v2064
        %v2118 = vadd.f32 %v2047, %v2064
        %v2119 = vadd.f32 %v2048, %v2064
        %v2120 = vadd.f32 %v2049, %v2064
        %v2121 = vadd.f32 %v2050, %v2064
        %v2122 = vadd.f32 %v2051, %v2064
        %v2123 = vadd.f32 %v2052, %v2064
        %v2124 = vadd.f32 %v2053, %v2064
        %v2125 = vadd.f32 %v2054, %v2064
        %v2126 = vadd.f32 %v2055, %v2064
        %v2127 = vadd.f32 %v2056, %v2064
        %v2128 = vadd.f32 %v2057, %v2064
        %v2129 = vadd.f32 %v2058, %v2064
        %2130 = vst.msk [vmem:[%s265] sm:$0xff] %vm1927, %v2066
        %2131 = vst.msk [vmem:[%s265 + $0x8] sm:$0xff] %vm1927, %v2067
        %2132 = vst.msk [vmem:[%s265 + $0x10] sm:$0xff] %vm1927, %v2068
        %2133 = vst.msk [vmem:[%s265 + $0x18] sm:$0xff] %vm1927, %v2069
        %2134 = vst.msk [vmem:[%s265 + $0x20] sm:$0xff] %vm1927, %v2070
        %2135 = vst.msk [vmem:[%s265 + $0x28] sm:$0xff] %vm1927, %v2071
        %2136 = vst.msk [vmem:[%s265 + $0x30] sm:$0xff] %vm1927, %v2072
        %2137 = vst.msk [vmem:[%s265 + $0x38] sm:$0xff] %vm1927, %v2073
        %2138 = vst.msk [vmem:[%s265 + $0x40] sm:$0xff] %vm1927, %v2074
        %2139 = vst.msk [vmem:[%s265 + $0x48] sm:$0xff] %vm1927, %v2075
        %2140 = vst.msk [vmem:[%s265 + $0x50] sm:$0xff] %vm1927, %v2076
        %2141 = vst.msk [vmem:[%s265 + $0x58] sm:$0xff] %vm1927, %v2077
        %2142 = vst.msk [vmem:[%s265 + $0x60] sm:$0xff] %vm1927, %v2078
        %2143 = vst.msk [vmem:[%s265 + $0x68] sm:$0xff] %vm1927, %v2079
        %2144 = vst.msk [vmem:[%s265 + $0x70] sm:$0xff] %vm1927, %v2080
        %2145 = vst.msk [vmem:[%s265 + $0x78] sm:$0xff] %vm1927, %v2081
        %2146 = vst.msk [vmem:[%s265 + $0x80] sm:$0xff] %vm1927, %v2082
        %2147 = vst.msk [vmem:[%s265 + $0x88] sm:$0xff] %vm1927, %v2083
        %2148 = vst.msk [vmem:[%s265 + $0x90] sm:$0xff] %vm1927, %v2084
        %2149 = vst.msk [vmem:[%s265 + $0x98] sm:$0xff] %vm1927, %v2085
        %2150 = vst.msk [vmem:[%s265 + $0xa0] sm:$0xff] %vm1927, %v2086
        %2151 = vst.msk [vmem:[%s265 + $0xa8] sm:$0xff] %vm1927, %v2087
        %2152 = vst.msk [vmem:[%s265 + $0xb0] sm:$0xff] %vm1927, %v2088
        %2153 = vst.msk [vmem:[%s265 + $0xb8] sm:$0xff] %vm1927, %v2089
        %2154 = vst.msk [vmem:[%s265 + $0xc0] sm:$0xff] %vm1927, %v2090
        %2155 = vst.msk [vmem:[%s265 + $0xc8] sm:$0xff] %vm1927, %v2091
        %2156 = vst.msk [vmem:[%s265 + $0xd0] sm:$0xff] %vm1927, %v2092
        %2157 = vst.msk [vmem:[%s265 + $0xd8] sm:$0xff] %vm1927, %v2093
        %2158 = vst.msk [vmem:[%s265 + $0xe0] sm:$0xff] %vm1927, %v2094
        %2159 = vst.msk [vmem:[%s265 + $0xe8] sm:$0xff] %vm1927, %v2095
        %2160 = vst.msk [vmem:[%s265 + $0xf0] sm:$0xff] %vm1927, %v2096
        %2161 = vst.msk [vmem:[%s265 + $0xf8] sm:$0xff] %vm1927, %v2097
        %2162 = vst.msk [vmem:[%s265 + $0x100] sm:$0xff] %vm1927, %v2098
        %2163 = vst.msk [vmem:[%s265 + $0x108] sm:$0xff] %vm1927, %v2099
        %2164 = vst.msk [vmem:[%s265 + $0x110] sm:$0xff] %vm1927, %v2100
        %2165 = vst.msk [vmem:[%s265 + $0x118] sm:$0xff] %vm1927, %v2101
        %2166 = vst.msk [vmem:[%s265 + $0x120] sm:$0xff] %vm1927, %v2102
        %2167 = vst.msk [vmem:[%s265 + $0x128] sm:$0xff] %vm1927, %v2103
        %2168 = vst.msk [vmem:[%s265 + $0x130] sm:$0xff] %vm1927, %v2104
        %2169 = vst.msk [vmem:[%s265 + $0x138] sm:$0xff] %vm1927, %v2105
        %2170 = vst.msk [vmem:[%s265 + $0x140] sm:$0xff] %vm1927, %v2106
        %2171 = vst.msk [vmem:[%s265 + $0x148] sm:$0xff] %vm1927, %v2107
        %2172 = vst.msk [vmem:[%s265 + $0x150] sm:$0xff] %vm1927, %v2108
        %2173 = vst.msk [vmem:[%s265 + $0x158] sm:$0xff] %vm1927, %v2109
        %2174 = vst.msk [vmem:[%s265 + $0x160] sm:$0xff] %vm1927, %v2110
        %2175 = vst.msk [vmem:[%s265 + $0x168] sm:$0xff] %vm1927, %v2111
        %2176 = vst.msk [vmem:[%s265 + $0x170] sm:$0xff] %vm1927, %v2112
        %2177 = vst.msk [vmem:[%s265 + $0x178] sm:$0xff] %vm1927, %v2113
        %2178 = vst.msk [vmem:[%s265 + $0x180] sm:$0xff] %vm1927, %v2114
        %2179 = vst.msk [vmem:[%s265 + $0x188] sm:$0xff] %vm1927, %v2115
        %2180 = vst.msk [vmem:[%s265 + $0x190] sm:$0xff] %vm1927, %v2116
        %2181 = vst.msk [vmem:[%s265 + $0x198] sm:$0xff] %vm1927, %v2117
        %2182 = vst.msk [vmem:[%s265 + $0x1a0] sm:$0xff] %vm1927, %v2118
        %2183 = vst.msk [vmem:[%s265 + $0x1a8] sm:$0xff] %vm1927, %v2119
        %2184 = vst.msk [vmem:[%s265 + $0x1b0] sm:$0xff] %vm1927, %v2120
        %2185 = vst.msk [vmem:[%s265 + $0x1b8] sm:$0xff] %vm1927, %v2121
        %2186 = vst.msk [vmem:[%s265 + $0x1c0] sm:$0xff] %vm1927, %v2122
        %2187 = vst.msk [vmem:[%s265 + $0x1c8] sm:$0xff] %vm1927, %v2123
        %2188 = vst.msk [vmem:[%s265 + $0x1d0] sm:$0xff] %vm1927, %v2124
        %2189 = vst.msk [vmem:[%s265 + $0x1d8] sm:$0xff] %vm1927, %v2125
        %2190 = vst.msk [vmem:[%s265 + $0x1e0] sm:$0xff] %vm1927, %v2126
        %2191 = vst.msk [vmem:[%s265 + $0x1e8] sm:$0xff] %vm1927, %v2127
        %2192 = vst.msk [vmem:[%s265 + $0x1f0] sm:$0xff] %vm1927, %v2128
        %2193 = vst.msk [vmem:[%s265 + $0x1f8] sm:$0xff] %vm1927, %v2129
      $region40: #{_matmul_pallas.1} parent=31 // pred_fallthru
        _
      %s2194 = smul.u32 64, %s19
      %p2195 = scmp.lt.s32.totalorder %s2194, 127
      %s2196 = scalar_select %p2195, %s2194, 127
      %p2197 = scmp.lt.s32.totalorder %s20, 0
      %s2198 = scalar_select %p2197, %s20, 0
      %s2199 = sadd.s32 %s2198, %s2196
      %s2200 = smul.addr %s2199, 8
      %s2201 = scalar_lea.vmem %s3, %s2200
      // Predicated region
      $region41: #{_matmul_pallas.1} parent=31 // pred_check
        %p2202 = pneg %p135
      $region42: #{_matmul_pallas.1} parent=31 // pred_check_branch
        %2204 = sbr.rel (%p2202) target = $region44
      $region43: #{_matmul_pallas.1} parent=31 // pred_region
        %s2205 = smul.u32 64, %s19
      $region44: #{_matmul_pallas.1} parent=31 // pred_fallthru
        _
    $region32: #{_matmul_pallas.1} parent=5 // pred_fallthru
      _
    %p2206 = scmp.le.s32.totalorder 2, %s9
    // Predicated region
    $region45: #{_matmul_pallas.1} parent=5 // pred_check
      %p2207 = pneg %p2206
    $region46: #{_matmul_pallas.1} parent=5 // pred_check_branch
      %2209 = sbr.rel (%p2207) target = $region48
    $region47: #{_matmul_pallas.1} parent=5 // pred_region
      %s2210 = ssub.s32 %s9, 2
      // Predicated region
      $region49: #{_matmul_pallas.1} parent=47 // pred_check
        %p2211 = pneg %p141
      $region50: #{_matmul_pallas.1} parent=47 // pred_check_branch
        %2213 = sbr.rel (%p2211) target = $region52
      $region51: #{_matmul_pallas.1} parent=47 // pred_region
        %s2214 = smul.u32 64, %s22
        %p2215 = scmp.lt.s32.totalorder %s2214, 127
        %s2216 = scalar_select %p2215, %s2214, 127
        %p2217 = scmp.lt.s32.totalorder %s23, 0
        %s2218 = scalar_select %p2217, %s23, 0
        %s2219 = sadd.s32 %s2218, %s2216
        %s2220 = smul.addr %s2219, 8
        %s2221 = scalar_lea.vmem %s3, %s2220
      $region52: #{_matmul_pallas.1} parent=47 // pred_fallthru
        _
    $region48: #{_matmul_pallas.1} parent=5 // pred_fallthru
      _
  $region6: #{_matmul_pallas.1} parent=0 // loop_footer
    %s13 = sadd.s32 1, %s9
  $region7: #{_matmul_pallas.1} parent=0 // loop_footer_branch
    %8 = sbr.rel target = $region3
  $region8: #{_matmul_pallas.1} parent=0 // loop_exit
    _

</llo_original>
